<compile_context>
chip_gen: v7x
topology: tpu7x:2x2x1
jax: 0.10.0
libtpu: 0.0.40
codegen_flags: <defaults>
</compile_context>

<pallas_src>
import jax
import jax.numpy as jnp
from jax.experimental import pallas as pl
from jax.experimental.pallas import tpu as pltpu


_INV_SQRT2 = 0.7071067811865476
_LN_EPS = 1e-12
_MIB = 1024 * 1024


def _round_up(a, b):
    return (a + b - 1) // b * b


def _device_kind():
    try:
        devs = jax.devices()
        if devs and devs[0].platform == "tpu":
            return devs[0].device_kind.lower()
    except Exception:
        pass
    return ""


def _vmem_capacity_bytes(kind):
    try:
        info = pltpu.get_tpu_info()
        cap = int(getattr(info, "vmem_capacity_bytes", 0) or 0)
        if cap > 0:
            return cap
    except Exception:
        pass
    if "v7" in kind:
        return 64 * _MIB
    return 128 * _MIB


def _default_tm(kind):
    # Streaming-regime roofline targets: v6e needs ~650 FLOP/byte -> big tm;
    # v7x only ~310 FLOP/byte and has half the VMEM; v5e is balanced near 256-512.
    if "v7" in kind:
        return 512
    if "v6" in kind:
        return 1024
    return 512


def _vmem_block_bytes(tm, ti, H, cbytes, abytes, wbuf):
    """Rough VMEM footprint for one pipelined step (incl. double buffers + live temps)."""
    return (2 * tm * H * 4                      # x tile (double-buffered)
            + 2 * tm * H * 4                    # output tile (double-buffered)
            + tm * H * cbytes                   # LayerNorm scratch
            + wbuf * ti * (2 * H * cbytes + 4)  # W1 chunk + W2 chunk + b1 chunk
            + 6 * H * 4                         # gamma / beta / b2
            + tm * ti * (4 + abytes))           # live h1 (f32) + gelu output


def _make_kernel(act_dtype):
    def kernel(x_ref, gamma_ref, beta_ref, w1_ref, b1_ref, w2_ref, b2_ref,
               o_ref, h_ref):
        """Grid = (token tiles, intermediate chunks); reduction over axis 1 (innermost)."""
        k = pl.program_id(1)

        # First intermediate chunk for this token tile: LayerNorm once, keep the
        # normalized activations resident in VMEM scratch for every chunk.
        @pl.when(k == 0)
        def _():
            x = x_ref[...]                                     # (tm, H) f32
            mean = jnp.mean(x, axis=-1, keepdims=True)
            var = jnp.mean(jnp.square(x - mean), axis=-1, keepdims=True)
            inv = jax.lax.rsqrt(var + _LN_EPS)
            # NOTE: fully zero-padded token rows have var == 0 -> inv ~ 1e6, but the
            # numerator is exactly 0, so the result is finite; padded rows are sliced off.
            h = (x - mean) * inv * gamma_ref[...] + beta_ref[...]
            h_ref[...] = h.astype(h_ref.dtype)                 # cast once for the MXU

        # dense_1 chunk: (tm, H) @ (H, ti) with f32 accumulation, then bias.
        h1 = jnp.dot(h_ref[...], w1_ref[...],
                     preferred_element_type=jnp.float32) + b1_ref[...]
        h1 = h1.astype(act_dtype)
        # Exact (erf) GELU -- matches torch.nn.functional.gelu default.
        a = 0.5 * h1 * (1.0 + jax.lax.erf(h1 * _INV_SQRT2))
        # dropout: identity in eval mode.
        # dense_2 chunk: (tm, ti) @ (ti, H) partial product, f32 accumulation.
        partial = jnp.dot(a.astype(w2_ref.dtype), w2_ref[...],
                          preferred_element_type=jnp.float32)

        # Accumulate directly into the resident output block (its index_map depends
        # only on the token-tile axis, so it stays in VMEM across all chunks).
        @pl.when(k == 0)
        def _():
            o_ref[...] = x_ref[...] + b2_ref[...] + partial    # residual + bias + first chunk

        @pl.when(k > 0)
        def _():
            o_ref[...] += partial

    return kernel


def mlp_module_forward(x, gamma, beta, w1, b1, w2, b2, *,
                       tm=None, ti=512, compute_dtype=jnp.bfloat16,
                       activation_dtype=jnp.float32, _force_streaming=False):
    """Fused LayerNorm -> Linear -> GELU -> Linear -> +residual (MLPModule.forward, eval).

    x: [B, S, H] float32.  w1: [H, I], w2: [I, H]  (i.e. nn.Linear.weight.T), b1: [I], b2: [H].
    compute_dtype: matmul-operand dtype (bf16 for MXU peak, f32 for the exact path);
    accumulation is always f32.  activation_dtype: dtype the GELU is evaluated in.
    tm / ti are token-tile and intermediate-chunk sizes; None/defaults auto-tune per chip.
    """
    B, S, H = x.shape
    Hw, I = w1.shape
    assert Hw == H and w2.shape == (I, H) and b1.shape == (I,) and b2.shape == (H,)

    kind = _device_kind()
    vmem_cap = _vmem_capacity_bytes(kind)
    budget = int(0.80 * vmem_cap)

    cbytes = jnp.dtype(compute_dtype).itemsize
    abytes = jnp.dtype(activation_dtype).itemsize

    T = B * S
    x2 = x.reshape(T, H).astype(jnp.float32)

    # ---- token tiling ----
    if tm is None:
        tm = _default_tm(kind)
    tm_eff = max(8, min(_round_up(tm, 8), _round_up(T, 8)))
    # Expose at least 2 token tiles so the "parallel" axis can be split across
    # TensorCores (v7x has 2 per chip); negligible overhead elsewhere.
    if _round_up(T, tm_eff) // tm_eff < 2 and tm_eff >= 16:
        tm_eff = _round_up(tm_eff // 2, 8)

    # ---- intermediate tiling: weight-resident fast path vs chunk streaming ----
    resident = (not _force_streaming) and (
        _vmem_block_bytes(tm_eff, I, H, cbytes, abytes, wbuf=1) <= budget)
    if resident:
        # W1+W2 (plus working set) fit in VMEM: keep them resident; fetched from HBM once.
        ti_eff = I
        I_pad = I
        wbuf_eff = 1
        weight_buffers = 1
    else:
        ti_eff = min(_round_up(ti, 128), _round_up(I, 128))
        wbuf_eff = 3 if vmem_cap >= 100 * _MIB else 2   # deeper buffering where VMEM is plentiful
        # Shrink ti first, then buffering depth, then tm, until the footprint fits.
        while _vmem_block_bytes(tm_eff, ti_eff, H, cbytes, abytes, wbuf_eff) > budget:
            if ti_eff > 128:
                ti_eff = max(128, (ti_eff // 2) // 128 * 128)
            elif wbuf_eff > 2:
                wbuf_eff = 2
            elif tm_eff > 64:
                tm_eff = _round_up(tm_eff // 2, 8)
            else:
                break
        I_pad = _round_up(I, ti_eff)
        weight_buffers = wbuf_eff if wbuf_eff != 2 else None   # None -> default double buffering

    T_pad = _round_up(T, tm_eff)
    if T_pad != T:
        x2 = jnp.pad(x2, ((0, T_pad - T), (0, 0)))
    nT = T_pad // tm_eff
    nI = I_pad // ti_eff

    # ---- weights / params (pad intermediate dim if chunked) ----
    w1c = w1.astype(compute_dtype)
    w2c = w2.astype(compute_dtype)
    b1f = b1.astype(jnp.float32)
    if I_pad != I:
        # Zero-padded intermediate columns: h1 = 0 -> gelu(0) = 0 -> contributes nothing.
        w1c = jnp.pad(w1c, ((0, 0), (0, I_pad - I)))
        b1f = jnp.pad(b1f, (0, I_pad - I))
        w2c = jnp.pad(w2c, ((0, I_pad - I), (0, 0)))

    gamma2 = gamma.reshape(1, H).astype(jnp.float32)
    beta2 = beta.reshape(1, H).astype(jnp.float32)
    b1_2 = b1f.reshape(1, I_pad)
    b2_2 = b2.reshape(1, H).astype(jnp.float32)

    # ---- VMEM limit: real footprint + headroom, clamped below the chip's physical VMEM ----
    limit_bytes = _vmem_block_bytes(tm_eff, ti_eff, H, cbytes, abytes, max(2, wbuf_eff))
    vmem_limit = int(min(max(limit_bytes + 8 * _MIB, 32 * _MIB), int(0.92 * vmem_cap)))

    # ---- advisory cost estimate (weights re-streamed nT times unless resident) ----
    w_stream = 1 if resident else nT
    cost = pl.CostEstimate(
        flops=4 * T_pad * H * I_pad,                 # two matmuls, 2 flops/MAC
        transcendentals=T_pad * I_pad,               # erf per intermediate element
        bytes_accessed=(2 * T_pad * H * 4            # x in + out
                        + w_stream * (2 * H * I_pad * cbytes + I_pad * 4)
                        + 3 * H * 4),
    )

    kernel = _make_kernel(activation_dtype)

    def _weight_spec(shape, index_map, nbuf):
        if nbuf is not None and hasattr(pl, "Buffered"):
            try:
                return pl.BlockSpec(shape, index_map, pipeline_mode=pl.Buffered(nbuf))
            except Exception:
                pass
        return pl.BlockSpec(shape, index_map)

    def _invoke(nbuf):
        grid_spec = pltpu.PrefetchScalarGridSpec(
            num_scalar_prefetch=0,
            grid=(nT, nI),
            in_specs=[
                pl.BlockSpec((tm_eff, H), lambda i, k: (i, 0)),        # x token tile
                pl.BlockSpec((1, H), lambda i, k: (0, 0)),             # gamma
                pl.BlockSpec((1, H), lambda i, k: (0, 0)),             # beta
                _weight_spec((H, ti_eff), lambda i, k: (0, k), nbuf),  # W1 chunk
                pl.BlockSpec((1, ti_eff), lambda i, k: (0, k)),        # b1 chunk
                _weight_spec((ti_eff, H), lambda i, k: (k, 0), nbuf),  # W2 chunk
                pl.BlockSpec((1, H), lambda i, k: (0, 0)),             # b2
            ],
            out_specs=pl.BlockSpec((tm_eff, H), lambda i, k: (i, 0)),
            scratch_shapes=[
                pltpu.VMEM((tm_eff, H), compute_dtype),   # LayerNorm output (reused across k)
            ],
        )
        return pl.pallas_call(
            kernel,
            out_shape=jax.ShapeDtypeStruct((T_pad, H), jnp.float32),
            grid_spec=grid_spec,
            compiler_params=pltpu.CompilerParams(
                dimension_semantics=("parallel", "arbitrary"),
                vmem_limit_bytes=vmem_limit,
            ),
            cost_estimate=cost,
        )(x2, gamma2, beta2, w1c, b1_2, w2c, b2_2)

    if weight_buffers is not None:
        try:
            out = _invoke(weight_buffers)
        except Exception:
            out = _invoke(None)   # fall back to default double buffering
    else:
        out = _invoke(None)

    return out[:T].reshape(B, S, H)


def _reference_forward(x, gamma, beta, w1, b1, w2, b2):
    """Pure-JAX f32 reference of the same forward pass."""
    mean = jnp.mean(x, axis=-1, keepdims=True)
    var = jnp.mean(jnp.square(x - mean), axis=-1, keepdims=True)
    h = (x - mean) / jnp.sqrt(var + _LN_EPS) * gamma + beta
    h1 = h @ w1 + b1
    a = 0.5 * h1 * (1.0 + jax.lax.erf(h1 * _INV_SQRT2))
    h2 = a @ w2 + b2
    return x + h2


if __name__ == "__main__":
    # Small shapes consistent with the module: [batch, seq, hidden]
    batch, seq, hidden = 2, 8, 32
    intermediate = 4 * hidden  # config default: intermediate_size = 4 * hidden_size

    key = jax.random.PRNGKey(0)
    kx, kw1, kb1, kw2, kb2, kw3, kb3, kw4, kb4 = jax.random.split(key, 9)

    x = jax.random.normal(kx, (batch, seq, hidden), dtype=jnp.float32)

    # LayerNorm: gamma=1, beta=0 (PyTorch default init)
    gamma = jnp.ones((hidden,), dtype=jnp.float32)
    beta = jnp.zeros((hidden,), dtype=jnp.float32)
    # Linear layers (stored as [in, out], i.e. W.T relative to nn.Linear.weight)
    s1 = 1.0 / float(hidden) ** 0.5
    s2 = 1.0 / float(intermediate) ** 0.5
    w1 = jax.random.uniform(kw1, (hidden, intermediate), jnp.float32, -s1, s1)
    b1 = jax.random.uniform(kb1, (intermediate,), jnp.float32, -s1, s1)
    w2 = jax.random.uniform(kw2, (intermediate, hidden), jnp.float32, -s2, s2)
    b2 = jax.random.uniform(kb2, (hidden,), jnp.float32, -s2, s2)

    ref = _reference_forward(x, gamma, beta, w1, b1, w2, b2)

    # 1) Exact path (f32 matmul operands) -- weight-resident fast path; tight tolerance.
    out_f32 = jax.block_until_ready(
        mlp_module_forward(x, gamma, beta, w1, b1, w2, b2, compute_dtype=jnp.float32))
    assert out_f32.shape == (batch, seq, hidden)
    assert jnp.allclose(out_f32, ref, atol=1e-4, rtol=1e-4), "f32 resident path mismatch"

    # 2) Fast path (bf16 matmul operands, f32 accumulation) -- looser tolerance.
    out_bf16 = jax.block_until_ready(
        mlp_module_forward(x, gamma, beta, w1, b1, w2, b2, compute_dtype=jnp.bfloat16))
    assert out_bf16.shape == (batch, seq, hidden)
    assert jnp.allclose(out_bf16, ref, atol=5e-2, rtol=5e-2), "bf16 resident path mismatch"

    # 3) Streamed-weight path (multi-chunk reduction over the intermediate dim),
    #    exercised by forcing streaming with a 2-chunk intermediate dimension.
    inter2 = 2 * intermediate
    s2b = 1.0 / float(inter2) ** 0.5
    w1b = jax.random.uniform(kw3, (hidden, inter2), jnp.float32, -s1, s1)
    b1b = jax.random.uniform(kb3, (inter2,), jnp.float32, -s1, s1)
    w2b = jax.random.uniform(kw4, (inter2, hidden), jnp.float32, -s2b, s2b)
    b2b = jax.random.uniform(kb4, (hidden,), jnp.float32, -s2b, s2b)
    ref_b = _reference_forward(x, gamma, beta, w1b, b1b, w2b, b2b)
    out_stream = jax.block_until_ready(
        mlp_module_forward(x, gamma, beta, w1b, b1b, w2b, b2b,
                           ti=128, compute_dtype=jnp.float32, _force_streaming=True))
    assert out_stream.shape == (batch, seq, hidden)
    assert jnp.allclose(out_stream, ref_b, atol=1e-4, rtol=1e-4), "streaming path mismatch"

    print("KERNEL_OK")
</pallas_src>

<mosaic_0001>
module attributes {stable_mosaic.version = 11 : i64} {
  func.func @kernel(%arg0: i32, %arg1: i32, %arg2: memref<8x32xf32, #tpu.memory_space<vmem>>, %arg3: memref<1x32xf32, #tpu.memory_space<vmem>>, %arg4: memref<1x32xf32, #tpu.memory_space<vmem>>, %arg5: memref<32x128xf32, #tpu.memory_space<vmem>>, %arg6: memref<1x128xf32, #tpu.memory_space<vmem>>, %arg7: memref<128x32xf32, #tpu.memory_space<vmem>>, %arg8: memref<1x32xf32, #tpu.memory_space<vmem>>, %arg9: memref<8x32xf32, #tpu.memory_space<vmem>>, %arg10: memref<8x32xf32, #tpu.memory_space<vmem>>) attributes {dimension_semantics = [#tpu.dimension_semantics<parallel>, #tpu.dimension_semantics<arbitrary>], iteration_bounds = array<i64: 2, 1>, scalar_prefetch = 0 : i64, scratch_operands = 1 : i64, tpu.core_type = #tpu.core_type<tc>, window_params = [{transform_indices = @transform_0, window_bounds = array<i64: 8, 32>}, {pipeline_mode = #tpu.pipeline_mode<synchronous>, transform_indices = @transform_1, window_bounds = array<i64: 1, 32>}, {pipeline_mode = #tpu.pipeline_mode<synchronous>, transform_indices = @transform_2, window_bounds = array<i64: 1, 32>}, {pipeline_mode = #tpu.pipeline_mode<synchronous>, transform_indices = @transform_3, window_bounds = array<i64: 32, 128>}, {transform_indices = @transform_4, window_bounds = array<i64: 1, 128>}, {pipeline_mode = #tpu.pipeline_mode<synchronous>, transform_indices = @transform_5, window_bounds = array<i64: 128, 32>}, {pipeline_mode = #tpu.pipeline_mode<synchronous>, transform_indices = @transform_6, window_bounds = array<i64: 1, 32>}, {transform_indices = @transform_7, window_bounds = array<i64: 8, 32>}]} {
    %c0_i32 = arith.constant 0 : i32
    %0 = arith.cmpi eq, %arg1, %c0_i32 : i32
    %1 = arith.extui %0 : i1 to i32
    %c0_i32_0 = arith.constant 0 : i32
    %2 = arith.cmpi ne, %1, %c0_i32_0 : i32
    scf.if %2 {
      %c0_16 = arith.constant 0 : index
      %c0_17 = arith.constant 0 : index
      %25 = vector.load %arg2[%c0_16, %c0_17] : memref<8x32xf32, #tpu.memory_space<vmem>>, vector<8x32xf32>
      %cst_18 = arith.constant dense<0.000000e+00> : vector<8xf32>
      %26 = vector.multi_reduction <add>, %25, %cst_18 [1] : vector<8x32xf32> to vector<8xf32>
      %27 = vector.shape_cast %26 : vector<8xf32> to vector<8x1xf32>
      %cst_19 = arith.constant 3.200000e+01 : f32
      %28 = vector.broadcast %cst_19 : f32 to vector<8x1xf32>
      %29 = arith.divf %27, %28 : vector<8x1xf32>
      %30 = vector.broadcast %29 : vector<8x1xf32> to vector<8x32xf32>
      %31 = arith.subf %25, %30 : vector<8x32xf32>
      %32 = arith.mulf %31, %31 : vector<8x32xf32>
      %cst_20 = arith.constant dense<0.000000e+00> : vector<8xf32>
      %33 = vector.multi_reduction <add>, %32, %cst_20 [1] : vector<8x32xf32> to vector<8xf32>
      %34 = vector.shape_cast %33 : vector<8xf32> to vector<8x1xf32>
      %cst_21 = arith.constant 3.200000e+01 : f32
      %35 = vector.broadcast %cst_21 : f32 to vector<8x1xf32>
      %36 = arith.divf %34, %35 : vector<8x1xf32>
      %cst_22 = arith.constant 9.99999996E-13 : f32
      %37 = vector.broadcast %cst_22 : f32 to vector<8x1xf32>
      %38 = arith.addf %36, %37 : vector<8x1xf32>
      %39 = math.rsqrt %38 : vector<8x1xf32>
      %40 = vector.broadcast %29 : vector<8x1xf32> to vector<8x32xf32>
      %41 = arith.subf %25, %40 : vector<8x32xf32>
      %42 = vector.broadcast %39 : vector<8x1xf32> to vector<8x32xf32>
      %43 = arith.mulf %41, %42 : vector<8x32xf32>
      %c0_23 = arith.constant 0 : index
      %c0_24 = arith.constant 0 : index
      %44 = vector.load %arg3[%c0_23, %c0_24] : memref<1x32xf32, #tpu.memory_space<vmem>>, vector<1x32xf32>
      %45 = vector.broadcast %44 : vector<1x32xf32> to vector<8x32xf32>
      %46 = arith.mulf %43, %45 : vector<8x32xf32>
      %c0_25 = arith.constant 0 : index
      %c0_26 = arith.constant 0 : index
      %47 = vector.load %arg4[%c0_25, %c0_26] : memref<1x32xf32, #tpu.memory_space<vmem>>, vector<1x32xf32>
      %48 = vector.broadcast %47 : vector<1x32xf32> to vector<8x32xf32>
      %49 = arith.addf %46, %48 : vector<8x32xf32>
      %c0_27 = arith.constant 0 : index
      %c0_28 = arith.constant 0 : index
      %50 = vector.load %arg10[%c0_27, %c0_28] : memref<8x32xf32, #tpu.memory_space<vmem>>, vector<8x32xf32>
      tpu.vector_store %arg10[%c0_27, %c0_28], %49 {strides = array<i32>} : memref<8x32xf32, #tpu.memory_space<vmem>>, vector<8x32xf32>,
    } else {
    }
    %c0 = arith.constant 0 : index
    %c0_1 = arith.constant 0 : index
    %3 = vector.load %arg10[%c0, %c0_1] : memref<8x32xf32, #tpu.memory_space<vmem>>, vector<8x32xf32>
    %c0_2 = arith.constant 0 : index
    %c0_3 = arith.constant 0 : index
    %4 = vector.load %arg5[%c0_2, %c0_3] : memref<32x128xf32, #tpu.memory_space<vmem>>, vector<32x128xf32>
    %cst = arith.constant dense<0.000000e+00> : vector<8x128xf32>
    %5 = tpu.matmul %3, %4, %cst {dimension_numbers = #tpu.dot_dimension_numbers<[1], [0], [0], [1], [0, 0, 1, 1], [], []>} : vector<8x32xf32>, vector<32x128xf32>, vector<8x128xf32> -> vector<8x128xf32>
    %c0_4 = arith.constant 0 : index
    %c0_5 = arith.constant 0 : index
    %6 = vector.load %arg6[%c0_4, %c0_5] : memref<1x128xf32, #tpu.memory_space<vmem>>, vector<1x128xf32>
    %7 = vector.broadcast %6 : vector<1x128xf32> to vector<8x128xf32>
    %8 = arith.addf %5, %7 : vector<8x128xf32>
    %cst_6 = arith.constant 5.000000e-01 : f32
    %9 = vector.broadcast %cst_6 : f32 to vector<8x128xf32>
    %10 = arith.mulf %9, %8 : vector<8x128xf32>
    %cst_7 = arith.constant 0.707106769 : f32
    %11 = vector.broadcast %cst_7 : f32 to vector<8x128xf32>
    %12 = arith.mulf %8, %11 : vector<8x128xf32>
    %13 = math.erf %12 : vector<8x128xf32>
    %cst_8 = arith.constant 1.000000e+00 : f32
    %14 = vector.broadcast %cst_8 : f32 to vector<8x128xf32>
    %15 = arith.addf %14, %13 : vector<8x128xf32>
    %16 = arith.mulf %10, %15 : vector<8x128xf32>
    %c0_9 = arith.constant 0 : index
    %c0_10 = arith.constant 0 : index
    %17 = vector.load %arg7[%c0_9, %c0_10] : memref<128x32xf32, #tpu.memory_space<vmem>>, vector<128x32xf32>
    %cst_11 = arith.constant dense<0.000000e+00> : vector<8x32xf32>
    %18 = tpu.matmul %16, %17, %cst_11 {dimension_numbers = #tpu.dot_dimension_numbers<[1], [0], [0], [1], [0, 0, 1, 1], [], []>} : vector<8x128xf32>, vector<128x32xf32>, vector<8x32xf32> -> vector<8x32xf32>
    %c0_i32_12 = arith.constant 0 : i32
    %19 = arith.cmpi eq, %arg1, %c0_i32_12 : i32
    %20 = arith.extui %19 : i1 to i32
    %c0_i32_13 = arith.constant 0 : i32
    %21 = arith.cmpi ne, %20, %c0_i32_13 : i32
    scf.if %21 {
      %c0_16 = arith.constant 0 : index
      %c0_17 = arith.constant 0 : index
      %25 = vector.load %arg2[%c0_16, %c0_17] : memref<8x32xf32, #tpu.memory_space<vmem>>, vector<8x32xf32>
      %c0_18 = arith.constant 0 : index
      %c0_19 = arith.constant 0 : index
      %26 = vector.load %arg8[%c0_18, %c0_19] : memref<1x32xf32, #tpu.memory_space<vmem>>, vector<1x32xf32>
      %27 = vector.broadcast %26 : vector<1x32xf32> to vector<8x32xf32>
      %28 = arith.addf %25, %27 : vector<8x32xf32>
      %29 = arith.addf %28, %18 : vector<8x32xf32>
      %c0_20 = arith.constant 0 : index
      %c0_21 = arith.constant 0 : index
      %30 = vector.load %arg9[%c0_20, %c0_21] : memref<8x32xf32, #tpu.memory_space<vmem>>, vector<8x32xf32>
      tpu.vector_store %arg9[%c0_20, %c0_21], %29 {strides = array<i32>} : memref<8x32xf32, #tpu.memory_space<vmem>>, vector<8x32xf32>,
    } else {
    }
    %c0_i32_14 = arith.constant 0 : i32
    %22 = arith.cmpi sgt, %arg1, %c0_i32_14 : i32
    %23 = arith.extui %22 : i1 to i32
    %c0_i32_15 = arith.constant 0 : i32
    %24 = arith.cmpi ne, %23, %c0_i32_15 : i32
    scf.if %24 {
      %c0_16 = arith.constant 0 : index
      %c0_17 = arith.constant 0 : index
      %25 = vector.load %arg9[%c0_16, %c0_17] : memref<8x32xf32, #tpu.memory_space<vmem>>, vector<8x32xf32>
      %26 = arith.addf %25, %18 : vector<8x32xf32>
      %c0_18 = arith.constant 0 : index
      %c0_19 = arith.constant 0 : index
      %27 = vector.load %arg9[%c0_18, %c0_19] : memref<8x32xf32, #tpu.memory_space<vmem>>, vector<8x32xf32>
      tpu.vector_store %arg9[%c0_18, %c0_19], %26 {strides = array<i32>} : memref<8x32xf32, #tpu.memory_space<vmem>>, vector<8x32xf32>,
    } else {
    }
    return
  }
  func.func @transform_0(%arg0: i32, %arg1: i32) -> (i32, i32) {
    %c0_i32 = arith.constant 0 : i32
    %c0_i32_0 = arith.constant 0 : i32
    return %arg0, %c0_i32 : i32, i32
  }
  func.func @transform_1(%arg0: i32, %arg1: i32) -> (i32, i32) {
    %c0_i32 = arith.constant 0 : i32
    %c0_i32_0 = arith.constant 0 : i32
    %c0_i32_1 = arith.constant 0 : i32
    return %c0_i32, %c0_i32_0 : i32, i32
  }
  func.func @transform_2(%arg0: i32, %arg1: i32) -> (i32, i32) {
    %c0_i32 = arith.constant 0 : i32
    %c0_i32_0 = arith.constant 0 : i32
    %c0_i32_1 = arith.constant 0 : i32
    return %c0_i32, %c0_i32_0 : i32, i32
  }
  func.func @transform_3(%arg0: i32, %arg1: i32) -> (i32, i32) {
    %c0_i32 = arith.constant 0 : i32
    %c0_i32_0 = arith.constant 0 : i32
    return %c0_i32, %arg1 : i32, i32
  }
  func.func @transform_4(%arg0: i32, %arg1: i32) -> (i32, i32) {
    %c0_i32 = arith.constant 0 : i32
    %c0_i32_0 = arith.constant 0 : i32
    return %c0_i32, %arg1 : i32, i32
  }
  func.func @transform_5(%arg0: i32, %arg1: i32) -> (i32, i32) {
    %c0_i32 = arith.constant 0 : i32
    %c0_i32_0 = arith.constant 0 : i32
    return %arg1, %c0_i32 : i32, i32
  }
  func.func @transform_6(%arg0: i32, %arg1: i32) -> (i32, i32) {
    %c0_i32 = arith.constant 0 : i32
    %c0_i32_0 = arith.constant 0 : i32
    %c0_i32_1 = arith.constant 0 : i32
    return %c0_i32, %c0_i32_0 : i32, i32
  }
  func.func @transform_7(%arg0: i32, %arg1: i32) -> (i32, i32) {
    %c0_i32 = arith.constant 0 : i32
    %c0_i32_0 = arith.constant 0 : i32
    return %arg0, %c0_i32 : i32, i32
  }
}

module attributes {stable_mosaic.version = 11 : i64} {
  func.func @kernel(%arg0: i32, %arg1: i32, %arg2: memref<8x32xf32, #tpu.memory_space<vmem>>, %arg3: memref<1x32xf32, #tpu.memory_space<vmem>>, %arg4: memref<1x32xf32, #tpu.memory_space<vmem>>, %arg5: memref<32x128xf32, #tpu.memory_space<vmem>>, %arg6: memref<1x128xf32, #tpu.memory_space<vmem>>, %arg7: memref<128x32xf32, #tpu.memory_space<vmem>>, %arg8: memref<1x32xf32, #tpu.memory_space<vmem>>, %arg9: memref<8x32xf32, #tpu.memory_space<vmem>>, %arg10: memref<8x32xf32, #tpu.memory_space<vmem>>) attributes {dimension_semantics = [#tpu.dimension_semantics<parallel>, #tpu.dimension_semantics<arbitrary>], iteration_bounds = array<i64: 2, 1>, scalar_prefetch = 0 : i64, scratch_operands = 1 : i64, tpu.core_type = #tpu.core_type<tc>, window_params = [{transform_indices = @transform_0, window_bounds = array<i64: 8, 32>}, {pipeline_mode = #tpu.pipeline_mode<synchronous>, transform_indices = @transform_1, window_bounds = array<i64: 1, 32>}, {pipeline_mode = #tpu.pipeline_mode<synchronous>, transform_indices = @transform_2, window_bounds = array<i64: 1, 32>}, {transform_indices = @transform_3, window_bounds = array<i64: 32, 128>}, {transform_indices = @transform_4, window_bounds = array<i64: 1, 128>}, {transform_indices = @transform_5, window_bounds = array<i64: 128, 32>}, {pipeline_mode = #tpu.pipeline_mode<synchronous>, transform_indices = @transform_6, window_bounds = array<i64: 1, 32>}, {transform_indices = @transform_7, window_bounds = array<i64: 8, 32>}]} {
    %c0_i32 = arith.constant 0 : i32
    %0 = arith.cmpi eq, %arg1, %c0_i32 : i32
    %1 = arith.extui %0 : i1 to i32
    %c0_i32_0 = arith.constant 0 : i32
    %2 = arith.cmpi ne, %1, %c0_i32_0 : i32
    scf.if %2 {
      %c0_16 = arith.constant 0 : index
      %c0_17 = arith.constant 0 : index
      %25 = vector.load %arg2[%c0_16, %c0_17] : memref<8x32xf32, #tpu.memory_space<vmem>>, vector<8x32xf32>
      %cst_18 = arith.constant dense<0.000000e+00> : vector<8xf32>
      %26 = vector.multi_reduction <add>, %25, %cst_18 [1] : vector<8x32xf32> to vector<8xf32>
      %27 = vector.shape_cast %26 : vector<8xf32> to vector<8x1xf32>
      %cst_19 = arith.constant 3.200000e+01 : f32
      %28 = vector.broadcast %cst_19 : f32 to vector<8x1xf32>
      %29 = arith.divf %27, %28 : vector<8x1xf32>
      %30 = vector.broadcast %29 : vector<8x1xf32> to vector<8x32xf32>
      %31 = arith.subf %25, %30 : vector<8x32xf32>
      %32 = arith.mulf %31, %31 : vector<8x32xf32>
      %cst_20 = arith.constant dense<0.000000e+00> : vector<8xf32>
      %33 = vector.multi_reduction <add>, %32, %cst_20 [1] : vector<8x32xf32> to vector<8xf32>
      %34 = vector.shape_cast %33 : vector<8xf32> to vector<8x1xf32>
      %cst_21 = arith.constant 3.200000e+01 : f32
      %35 = vector.broadcast %cst_21 : f32 to vector<8x1xf32>
      %36 = arith.divf %34, %35 : vector<8x1xf32>
      %cst_22 = arith.constant 9.99999996E-13 : f32
      %37 = vector.broadcast %cst_22 : f32 to vector<8x1xf32>
      %38 = arith.addf %36, %37 : vector<8x1xf32>
      %39 = math.rsqrt %38 : vector<8x1xf32>
      %40 = vector.broadcast %29 : vector<8x1xf32> to vector<8x32xf32>
      %41 = arith.subf %25, %40 : vector<8x32xf32>
      %42 = vector.broadcast %39 : vector<8x1xf32> to vector<8x32xf32>
      %43 = arith.mulf %41, %42 : vector<8x32xf32>
      %c0_23 = arith.constant 0 : index
      %c0_24 = arith.constant 0 : index
      %44 = vector.load %arg3[%c0_23, %c0_24] : memref<1x32xf32, #tpu.memory_space<vmem>>, vector<1x32xf32>
      %45 = vector.broadcast %44 : vector<1x32xf32> to vector<8x32xf32>
      %46 = arith.mulf %43, %45 : vector<8x32xf32>
      %c0_25 = arith.constant 0 : index
      %c0_26 = arith.constant 0 : index
      %47 = vector.load %arg4[%c0_25, %c0_26] : memref<1x32xf32, #tpu.memory_space<vmem>>, vector<1x32xf32>
      %48 = vector.broadcast %47 : vector<1x32xf32> to vector<8x32xf32>
      %49 = arith.addf %46, %48 : vector<8x32xf32>
      %c0_27 = arith.constant 0 : index
      %c0_28 = arith.constant 0 : index
      %50 = vector.load %arg10[%c0_27, %c0_28] : memref<8x32xf32, #tpu.memory_space<vmem>>, vector<8x32xf32>
      tpu.vector_store %arg10[%c0_27, %c0_28], %49 {strides = array<i32>} : memref<8x32xf32, #tpu.memory_space<vmem>>, vector<8x32xf32>,
    } else {
    }
    %c0 = arith.constant 0 : index
    %c0_1 = arith.constant 0 : index
    %3 = vector.load %arg10[%c0, %c0_1] : memref<8x32xf32, #tpu.memory_space<vmem>>, vector<8x32xf32>
    %c0_2 = arith.constant 0 : index
    %c0_3 = arith.constant 0 : index
    %4 = vector.load %arg5[%c0_2, %c0_3] : memref<32x128xf32, #tpu.memory_space<vmem>>, vector<32x128xf32>
    %cst = arith.constant dense<0.000000e+00> : vector<8x128xf32>
    %5 = tpu.matmul %3, %4, %cst {dimension_numbers = #tpu.dot_dimension_numbers<[1], [0], [0], [1], [0, 0, 1, 1], [], []>} : vector<8x32xf32>, vector<32x128xf32>, vector<8x128xf32> -> vector<8x128xf32>
    %c0_4 = arith.constant 0 : index
    %c0_5 = arith.constant 0 : index
    %6 = vector.load %arg6[%c0_4, %c0_5] : memref<1x128xf32, #tpu.memory_space<vmem>>, vector<1x128xf32>
    %7 = vector.broadcast %6 : vector<1x128xf32> to vector<8x128xf32>
    %8 = arith.addf %5, %7 : vector<8x128xf32>
    %cst_6 = arith.constant 5.000000e-01 : f32
    %9 = vector.broadcast %cst_6 : f32 to vector<8x128xf32>
    %10 = arith.mulf %9, %8 : vector<8x128xf32>
    %cst_7 = arith.constant 0.707106769 : f32
    %11 = vector.broadcast %cst_7 : f32 to vector<8x128xf32>
    %12 = arith.mulf %8, %11 : vector<8x128xf32>
    %13 = math.erf %12 : vector<8x128xf32>
    %cst_8 = arith.constant 1.000000e+00 : f32
    %14 = vector.broadcast %cst_8 : f32 to vector<8x128xf32>
    %15 = arith.addf %14, %13 : vector<8x128xf32>
    %16 = arith.mulf %10, %15 : vector<8x128xf32>
    %c0_9 = arith.constant 0 : index
    %c0_10 = arith.constant 0 : index
    %17 = vector.load %arg7[%c0_9, %c0_10] : memref<128x32xf32, #tpu.memory_space<vmem>>, vector<128x32xf32>
    %cst_11 = arith.constant dense<0.000000e+00> : vector<8x32xf32>
    %18 = tpu.matmul %16, %17, %cst_11 {dimension_numbers = #tpu.dot_dimension_numbers<[1], [0], [0], [1], [0, 0, 1, 1], [], []>} : vector<8x128xf32>, vector<128x32xf32>, vector<8x32xf32> -> vector<8x32xf32>
    %c0_i32_12 = arith.constant 0 : i32
    %19 = arith.cmpi eq, %arg1, %c0_i32_12 : i32
    %20 = arith.extui %19 : i1 to i32
    %c0_i32_13 = arith.constant 0 : i32
    %21 = arith.cmpi ne, %20, %c0_i32_13 : i32
    scf.if %21 {
      %c0_16 = arith.constant 0 : index
      %c0_17 = arith.constant 0 : index
      %25 = vector.load %arg2[%c0_16, %c0_17] : memref<8x32xf32, #tpu.memory_space<vmem>>, vector<8x32xf32>
      %c0_18 = arith.constant 0 : index
      %c0_19 = arith.constant 0 : index
      %26 = vector.load %arg8[%c0_18, %c0_19] : memref<1x32xf32, #tpu.memory_space<vmem>>, vector<1x32xf32>
      %27 = vector.broadcast %26 : vector<1x32xf32> to vector<8x32xf32>
      %28 = arith.addf %25, %27 : vector<8x32xf32>
      %29 = arith.addf %28, %18 : vector<8x32xf32>
      %c0_20 = arith.constant 0 : index
      %c0_21 = arith.constant 0 : index
      %30 = vector.load %arg9[%c0_20, %c0_21] : memref<8x32xf32, #tpu.memory_space<vmem>>, vector<8x32xf32>
      tpu.vector_store %arg9[%c0_20, %c0_21], %29 {strides = array<i32>} : memref<8x32xf32, #tpu.memory_space<vmem>>, vector<8x32xf32>,
    } else {
    }
    %c0_i32_14 = arith.constant 0 : i32
    %22 = arith.cmpi sgt, %arg1, %c0_i32_14 : i32
    %23 = arith.extui %22 : i1 to i32
    %c0_i32_15 = arith.constant 0 : i32
    %24 = arith.cmpi ne, %23, %c0_i32_15 : i32
    scf.if %24 {
      %c0_16 = arith.constant 0 : index
      %c0_17 = arith.constant 0 : index
      %25 = vector.load %arg9[%c0_16, %c0_17] : memref<8x32xf32, #tpu.memory_space<vmem>>, vector<8x32xf32>
      %26 = arith.addf %25, %18 : vector<8x32xf32>
      %c0_18 = arith.constant 0 : index
      %c0_19 = arith.constant 0 : index
      %27 = vector.load %arg9[%c0_18, %c0_19] : memref<8x32xf32, #tpu.memory_space<vmem>>, vector<8x32xf32>
      tpu.vector_store %arg9[%c0_18, %c0_19], %26 {strides = array<i32>} : memref<8x32xf32, #tpu.memory_space<vmem>>, vector<8x32xf32>,
    } else {
    }
    return
  }
  func.func @transform_0(%arg0: i32, %arg1: i32) -> (i32, i32) {
    %c0_i32 = arith.constant 0 : i32
    %c0_i32_0 = arith.constant 0 : i32
    return %arg0, %c0_i32 : i32, i32
  }
  func.func @transform_1(%arg0: i32, %arg1: i32) -> (i32, i32) {
    %c0_i32 = arith.constant 0 : i32
    %c0_i32_0 = arith.constant 0 : i32
    %c0_i32_1 = arith.constant 0 : i32
    return %c0_i32, %c0_i32_0 : i32, i32
  }
  func.func @transform_2(%arg0: i32, %arg1: i32) -> (i32, i32) {
    %c0_i32 = arith.constant 0 : i32
    %c0_i32_0 = arith.constant 0 : i32
    %c0_i32_1 = arith.constant 0 : i32
    return %c0_i32, %c0_i32_0 : i32, i32
  }
  func.func @transform_3(%arg0: i32, %arg1: i32) -> (i32, i32) {
    %c0_i32 = arith.constant 0 : i32
    %c0_i32_0 = arith.constant 0 : i32
    return %c0_i32, %arg1 : i32, i32
  }
  func.func @transform_4(%arg0: i32, %arg1: i32) -> (i32, i32) {
    %c0_i32 = arith.constant 0 : i32
    %c0_i32_0 = arith.constant 0 : i32
    return %c0_i32, %arg1 : i32, i32
  }
  func.func @transform_5(%arg0: i32, %arg1: i32) -> (i32, i32) {
    %c0_i32 = arith.constant 0 : i32
    %c0_i32_0 = arith.constant 0 : i32
    return %arg1, %c0_i32 : i32, i32
  }
  func.func @transform_6(%arg0: i32, %arg1: i32) -> (i32, i32) {
    %c0_i32 = arith.constant 0 : i32
    %c0_i32_0 = arith.constant 0 : i32
    %c0_i32_1 = arith.constant 0 : i32
    return %c0_i32, %c0_i32_0 : i32, i32
  }
  func.func @transform_7(%arg0: i32, %arg1: i32) -> (i32, i32) {
    %c0_i32 = arith.constant 0 : i32
    %c0_i32_0 = arith.constant 0 : i32
    return %arg0, %c0_i32 : i32, i32
  }
}

</mosaic_0001>

<llo_original>
// kernel: tpu_custom_call.1
$region0: #{tpu_custom_call.1}
  #allocation0 [shape = 'u32[]', space=smem, size = 0x4, offset = 0x4, fixed_abs, tag = 'smem constant byte address 0x4 - core index']
  #allocation1 [shape = 'u32[144,128]{1,0:T(1,128)}', space=vmem, size = 0x12000, scoped, tag = 'internal scratch']
  #allocation2 [shape = 'f32[8,32]{1,0:T(8,128)}', space=vmem, size = 0x1000, scoped, tag = 'scratch operand']
  %s0 = inlined_call_operand.vmem [shape: f32[16,32], index: 0, kind: input, shape index: {}]
  %s1 = inlined_call_operand.vmem [shape: f32[1,32], index: 1, kind: input, shape index: {}]
  %s2 = inlined_call_operand.vmem [shape: f32[1,32], index: 2, kind: input, shape index: {}]
  %s3 = inlined_call_operand.vmem [shape: f32[32,128], index: 3, kind: input, shape index: {}]
  %s4 = inlined_call_operand.vmem [shape: f32[1,128], index: 4, kind: input, shape index: {}]
  %s5 = inlined_call_operand.vmem [shape: f32[128,32], index: 5, kind: input, shape index: {}]
  %s6 = inlined_call_operand.vmem [shape: f32[1,32], index: 6, kind: input, shape index: {}]
  %s7 = inlined_call_operand.hbm [shape: f32[16,32], index: 7, kind: output, shape index: {}]
  %s8 = sld [smem:[#allocation0]]
  $region73: #{tpu_custom_call.1} parent=0
    _
  %s10 = ssub.s32 1, %s8
  %s11 = scalar_select 0, %s10, %s8
  $region1: #{tpu_custom_call.1} parent=0
    #allocation3 [shape = 'u8[8192]{0}', space=vmem, size = 0x2000, scoped, tag = 'output window, operand 0']
    #allocation4 [shape = 's32[2]{0}', space=sflag, size = 0x8, scoped, tag = 'scoped memory for tpu_custom_call.1']
    %12 = vsyncpa [#allocation4], 0
    %s13 = scalar_lea.sflag [#allocation4], 1
    %14 = vsyncpa %s13, 0
    loop: start=0, step=1, limit=4
    $region2: #{tpu_custom_call.1} parent=1 // loop_pre_header
      _
    $region3: #{tpu_custom_call.1} parent=1 // loop_header
      %s16 = sphi 0, %s20
      %p17 = scmp.ge.s32.totalorder %s16, 4
      %s23 = sphi 0, %s35
      %s24 = sphi 0, %s31
      %s25 = sphi 0, %s23
      %s26 = sphi 0, %s24
      %s27 = sphi 0, %s25
      %s28 = sphi 0, %s26
      %s38 = sphi 0, %s40
      %s41 = sphi 0, %s38
      %s42 = sphi 0, %s41
      %s58 = sphi 0, %s42
      %s62 = sphi 0, %s62
      %s64 = sphi 0, %s62
      %s65 = sphi 0, %s64
      %s79 = sphi 0, %s65
      %s83 = sphi 0, %s83
      %s85 = sphi 0, %s83
      %s86 = sphi 0, %s85
      %s100 = sphi 0, %s86
      %s106 = sphi 0, %s108
      %s109 = sphi 0, %s106
      %s110 = sphi 0, %s109
      %s126 = sphi 0, %s110
      %s132 = sphi 0, %s134
      %s135 = sphi 0, %s132
      %s136 = sphi 0, %s135
      %s152 = sphi 0, %s136
      %s158 = sphi 0, %s160
      %s161 = sphi 0, %s158
      %s162 = sphi 0, %s161
      %s178 = sphi 0, %s162
      %s182 = sphi 0, %s182
      %s184 = sphi 0, %s182
      %s185 = sphi 0, %s184
      %s199 = sphi 0, %s185
      %s205 = sphi 0, %s207
      %s208 = sphi 0, %s205
      %s209 = sphi 0, %s208
      %s225 = sphi 0, %s209
    $region4: #{tpu_custom_call.1} parent=1 // loop_header_branch
      %19 = sbr.rel (%p17) target = $region8
    $region5: #{tpu_custom_call.1} parent=1 // loop_body
      %s21 = ssub.s32 %s16, 1
      %s22 = ssub.s32 %s16, 2
      %s29 = sadd.s32 1, %s24
      %p30 = scmp.ge.s32.totalorder %s29, 1
      %s31 = scalar_select %p30, 0, %s29
      %s32 = sadd.s32 1, %s23
      %s33 = scalar_select %p30, %s32, %s23
      %p34 = scmp.ge.s32.totalorder %s33, 2
      %s35 = scalar_select %p34, 0, %s33
      %s36 = ssub.s32 %s23, %s35
      %p37 = scmp.eq.s32.totalorder %s36, 0
      %s39 = sadd.s32 %s38, 1
      %s40 = scalar_select %p37, %s38, %s39
      %p43 = pneg %p37
      %p44 = scmp.eq.s32.totalorder %s16, 1
      %p45 = por %p43, %p44
      %p46 = scmp.ne.s32.totalorder %s38, %s41
      %p47 = scmp.eq.s32.totalorder %s16, 0
      %p48 = por %p46, %p47
      %p49 = scmp.ne.s32.totalorder %s38, %s41
      %p50 = scmp.eq.s32.totalorder %s21, 1
      %p51 = por %p49, %p50
      %p52 = scmp.ne.s32.totalorder %s41, %s42
      %p53 = scmp.eq.s32.totalorder %s21, 0
      %p54 = por %p52, %p53
      %p55 = scmp.ne.s32.totalorder %s41, %s42
      %p56 = scmp.eq.s32.totalorder %s22, 1
      %p57 = por %p55, %p56
      %p59 = scmp.ne.s32.totalorder %s42, %s58
      %p60 = scmp.eq.s32.totalorder %s22, 0
      %p61 = por %p59, %p60
      %s63 = sadd.s32 %s62, 1
      %p66 = scmp.eq.s32.totalorder %s16, 1
      %p67 = scmp.ne.s32.totalorder %s62, %s64
      %p68 = scmp.eq.s32.totalorder %s16, 0
      %p69 = por %p67, %p68
      %p70 = scmp.ne.s32.totalorder %s62, %s64
      %p71 = scmp.eq.s32.totalorder %s21, 1
      %p72 = por %p70, %p71
      %p73 = scmp.ne.s32.totalorder %s64, %s65
      %p74 = scmp.eq.s32.totalorder %s21, 0
      %p75 = por %p73, %p74
      %p76 = scmp.ne.s32.totalorder %s64, %s65
      %p77 = scmp.eq.s32.totalorder %s22, 1
      %p78 = por %p76, %p77
      %p80 = scmp.ne.s32.totalorder %s65, %s79
      %p81 = scmp.eq.s32.totalorder %s22, 0
      %p82 = por %p80, %p81
      %s84 = sadd.s32 %s83, 1
      %p87 = scmp.eq.s32.totalorder %s16, 1
      %p88 = scmp.ne.s32.totalorder %s83, %s85
      %p89 = scmp.eq.s32.totalorder %s16, 0
      %p90 = por %p88, %p89
      %p91 = scmp.ne.s32.totalorder %s83, %s85
      %p92 = scmp.eq.s32.totalorder %s21, 1
      %p93 = por %p91, %p92
      %p94 = scmp.ne.s32.totalorder %s85, %s86
      %p95 = scmp.eq.s32.totalorder %s21, 0
      %p96 = por %p94, %p95
      %p97 = scmp.ne.s32.totalorder %s85, %s86
      %p98 = scmp.eq.s32.totalorder %s22, 1
      %p99 = por %p97, %p98
      %p101 = scmp.ne.s32.totalorder %s86, %s100
      %p102 = scmp.eq.s32.totalorder %s22, 0
      %p103 = por %p101, %p102
      %s104 = ssub.s32 %s24, %s31
      %p105 = scmp.eq.s32.totalorder %s104, 0
      %s107 = sadd.s32 %s106, 1
      %s108 = scalar_select %p105, %s106, %s107
      %p111 = pneg %p105
      %p112 = scmp.eq.s32.totalorder %s16, 1
      %p113 = por %p111, %p112
      %p114 = scmp.ne.s32.totalorder %s106, %s109
      %p115 = scmp.eq.s32.totalorder %s16, 0
      %p116 = por %p114, %p115
      %p117 = scmp.ne.s32.totalorder %s106, %s109
      %p118 = scmp.eq.s32.totalorder %s21, 1
      %p119 = por %p117, %p118
      %p120 = scmp.ne.s32.totalorder %s109, %s110
      %p121 = scmp.eq.s32.totalorder %s21, 0
      %p122 = por %p120, %p121
      %p123 = scmp.ne.s32.totalorder %s109, %s110
      %p124 = scmp.eq.s32.totalorder %s22, 1
      %p125 = por %p123, %p124
      %p127 = scmp.ne.s32.totalorder %s110, %s126
      %p128 = scmp.eq.s32.totalorder %s22, 0
      %p129 = por %p127, %p128
      %s130 = ssub.s32 %s24, %s31
      %p131 = scmp.eq.s32.totalorder %s130, 0
      %s133 = sadd.s32 %s132, 1
      %s134 = scalar_select %p131, %s132, %s133
      %p137 = pneg %p131
      %p138 = scmp.eq.s32.totalorder %s16, 1
      %p139 = por %p137, %p138
      %p140 = scmp.ne.s32.totalorder %s132, %s135
      %p141 = scmp.eq.s32.totalorder %s16, 0
      %p142 = por %p140, %p141
      %p143 = scmp.ne.s32.totalorder %s132, %s135
      %p144 = scmp.eq.s32.totalorder %s21, 1
      %p145 = por %p143, %p144
      %p146 = scmp.ne.s32.totalorder %s135, %s136
      %p147 = scmp.eq.s32.totalorder %s21, 0
      %p148 = por %p146, %p147
      %p149 = scmp.ne.s32.totalorder %s135, %s136
      %p150 = scmp.eq.s32.totalorder %s22, 1
      %p151 = por %p149, %p150
      %p153 = scmp.ne.s32.totalorder %s136, %s152
      %p154 = scmp.eq.s32.totalorder %s22, 0
      %p155 = por %p153, %p154
      %s156 = ssub.s32 %s24, %s31
      %p157 = scmp.eq.s32.totalorder %s156, 0
      %s159 = sadd.s32 %s158, 1
      %s160 = scalar_select %p157, %s158, %s159
      %p163 = pneg %p157
      %p164 = scmp.eq.s32.totalorder %s16, 1
      %p165 = por %p163, %p164
      %p166 = scmp.ne.s32.totalorder %s158, %s161
      %p167 = scmp.eq.s32.totalorder %s16, 0
      %p168 = por %p166, %p167
      %p169 = scmp.ne.s32.totalorder %s158, %s161
      %p170 = scmp.eq.s32.totalorder %s21, 1
      %p171 = por %p169, %p170
      %p172 = scmp.ne.s32.totalorder %s161, %s162
      %p173 = scmp.eq.s32.totalorder %s21, 0
      %p174 = por %p172, %p173
      %p175 = scmp.ne.s32.totalorder %s161, %s162
      %p176 = scmp.eq.s32.totalorder %s22, 1
      %p177 = por %p175, %p176
      %p179 = scmp.ne.s32.totalorder %s162, %s178
      %p180 = scmp.eq.s32.totalorder %s22, 0
      %p181 = por %p179, %p180
      %s183 = sadd.s32 %s182, 1
      %p186 = scmp.eq.s32.totalorder %s16, 1
      %p187 = scmp.ne.s32.totalorder %s182, %s184
      %p188 = scmp.eq.s32.totalorder %s16, 0
      %p189 = por %p187, %p188
      %p190 = scmp.ne.s32.totalorder %s182, %s184
      %p191 = scmp.eq.s32.totalorder %s21, 1
      %p192 = por %p190, %p191
      %p193 = scmp.ne.s32.totalorder %s184, %s185
      %p194 = scmp.eq.s32.totalorder %s21, 0
      %p195 = por %p193, %p194
      %p196 = scmp.ne.s32.totalorder %s184, %s185
      %p197 = scmp.eq.s32.totalorder %s22, 1
      %p198 = por %p196, %p197
      %p200 = scmp.ne.s32.totalorder %s185, %s199
      %p201 = scmp.eq.s32.totalorder %s22, 0
      %p202 = por %p200, %p201
      %s203 = ssub.s32 %s23, %s35
      %p204 = scmp.eq.s32.totalorder %s203, 0
      %s206 = sadd.s32 %s205, 1
      %s207 = scalar_select %p204, %s205, %s206
      %p210 = pneg %p204
      %p211 = scmp.eq.s32.totalorder %s16, 1
      %p212 = por %p210, %p211
      %p213 = scmp.ne.s32.totalorder %s205, %s208
      %p214 = scmp.eq.s32.totalorder %s16, 0
      %p215 = por %p213, %p214
      %p216 = scmp.ne.s32.totalorder %s205, %s208
      %p217 = scmp.eq.s32.totalorder %s21, 1
      %p218 = por %p216, %p217
      %p219 = scmp.ne.s32.totalorder %s208, %s209
      %p220 = scmp.eq.s32.totalorder %s21, 0
      %p221 = por %p219, %p220
      %p222 = scmp.ne.s32.totalorder %s208, %s209
      %p223 = scmp.eq.s32.totalorder %s22, 1
      %p224 = por %p222, %p223
      %p226 = scmp.ne.s32.totalorder %s209, %s225
      %p227 = scmp.eq.s32.totalorder %s22, 0
      %p228 = por %p226, %p227
      %p229 = scmp.le.s32.totalorder 1, %s16
      %p230 = scmp.lt.s32.totalorder %s16, 3
      %p231 = pnand %p229, %p230
      %p232 = pneg %p231
      // Predicated region
      $region9: #{tpu_custom_call.1} parent=5 // pred_check
        _
      $region10: #{tpu_custom_call.1} parent=5 // pred_check_branch
        %234 = sbr.rel (%p231) target = $region12
      $region11: #{tpu_custom_call.1} parent=5 // pred_region
        %s235 = ssub.s32 %s16, 1
        // Predicated region
        $region13: #{tpu_custom_call.1} parent=11 // pred_check
          %p236 = pneg %p75
        $region14: #{tpu_custom_call.1} parent=11 // pred_check_branch
          %238 = sbr.rel (%p236) target = $region16
        $region15: #{tpu_custom_call.1} parent=11 // pred_region
          _
        $region16: #{tpu_custom_call.1} parent=11 // pred_fallthru
          _
        // Predicated region
        $region17: #{tpu_custom_call.1} parent=11 // pred_check
          %p239 = pneg %p96
        $region18: #{tpu_custom_call.1} parent=11 // pred_check_branch
          %241 = sbr.rel (%p239) target = $region20
        $region19: #{tpu_custom_call.1} parent=11 // pred_region
          _
        $region20: #{tpu_custom_call.1} parent=11 // pred_fallthru
          _
        // Predicated region
        $region21: #{tpu_custom_call.1} parent=11 // pred_check
          %p242 = pneg %p122
        $region22: #{tpu_custom_call.1} parent=11 // pred_check_branch
          %244 = sbr.rel (%p242) target = $region24
        $region23: #{tpu_custom_call.1} parent=11 // pred_region
          %p245 = scmp.lt.s32.totalorder %s26, 0
          %s246 = scalar_select %p245, %s26, 0
          %s247 = smul.addr %s246, 8
          %s248 = scalar_lea.vmem %s3, %s247
        $region24: #{tpu_custom_call.1} parent=11 // pred_fallthru
          _
        // Predicated region
        $region25: #{tpu_custom_call.1} parent=11 // pred_check
          %p249 = pneg %p148
        $region26: #{tpu_custom_call.1} parent=11 // pred_check_branch
          %251 = sbr.rel (%p249) target = $region28
        $region27: #{tpu_custom_call.1} parent=11 // pred_region
          %p252 = scmp.lt.s32.totalorder %s26, 0
          %s253 = scalar_select %p252, %s26, 0
          %s254 = scalar_lea.vmem %s4, %s253
        $region28: #{tpu_custom_call.1} parent=11 // pred_fallthru
          _
        // Predicated region
        $region29: #{tpu_custom_call.1} parent=11 // pred_check
          %p255 = pneg %p174
        $region30: #{tpu_custom_call.1} parent=11 // pred_check_branch
          %257 = sbr.rel (%p255) target = $region32
        $region31: #{tpu_custom_call.1} parent=11 // pred_region
          %s258 = smul.u32 16, %s26
          %p259 = scmp.lt.s32.totalorder %s258, 15
          %s260 = scalar_select %p259, %s258, 15
          %s261 = smul.addr %s260, 8
          %s262 = scalar_lea.vmem %s5, %s261
          %s263 = smul.u32 16, %s26
        $region32: #{tpu_custom_call.1} parent=11 // pred_fallthru
          _
        // Predicated region
        $region33: #{tpu_custom_call.1} parent=11 // pred_check
          %p264 = pneg %p195
        $region34: #{tpu_custom_call.1} parent=11 // pred_check_branch
          %266 = sbr.rel (%p264) target = $region36
        $region35: #{tpu_custom_call.1} parent=11 // pred_region
          _
        $region36: #{tpu_custom_call.1} parent=11 // pred_fallthru
          _
      $region12: #{tpu_custom_call.1} parent=5 // pred_fallthru
        _
      %p267 = scmp.lt.s32.totalorder %s16, 2
      // Predicated region
      $region37: #{tpu_custom_call.1} parent=5 // pred_check
        %p268 = pneg %p267
      $region38: #{tpu_custom_call.1} parent=5 // pred_check_branch
        %270 = sbr.rel (%p268) target = $region40
      $region39: #{tpu_custom_call.1} parent=5 // pred_region
        // Predicated region
        $region41: #{tpu_custom_call.1} parent=39 // pred_check
          %p271 = pneg %p48
        $region42: #{tpu_custom_call.1} parent=39 // pred_check_branch
          %273 = sbr.rel (%p271) target = $region44
        $region43: #{tpu_custom_call.1} parent=39 // pred_region
          %p274 = scmp.lt.s32.totalorder %s23, 1
          %s275 = scalar_select %p274, %s23, 1
          %s276 = smul.addr %s275, 8
          %s277 = scalar_lea.vmem %s0, %s276
        $region44: #{tpu_custom_call.1} parent=39 // pred_fallthru
          _
      $region40: #{tpu_custom_call.1} parent=5 // pred_fallthru
        _
      %p278 = scmp.le.s32.totalorder 1, %s16
      %p279 = scmp.lt.s32.totalorder %s16, 3
      %p280 = pnand %p278, %p279
      %p281 = pneg %p280
      // Predicated region
      $region45: #{tpu_custom_call.1} parent=5 // pred_check
        _
      $region46: #{tpu_custom_call.1} parent=5 // pred_check_branch
        %283 = sbr.rel (%p280) target = $region48
      $region47: #{tpu_custom_call.1} parent=5 // pred_region
        %s284 = ssub.s32 %s16, 1
        %p285 = scmp.lt.s32.totalorder %s25, 1
        %s286 = scalar_select %p285, %s25, 1
        %s287 = smul.addr %s286, 8
        %s288 = scalar_lea.vmem %s0, %s287
        %p289 = pneg %p54
        %p290 = pneg %p51
        %p291 = pneg %p75
        %p292 = pneg %p72
        %p293 = pneg %p96
        %p294 = pneg %p93
        %p295 = scmp.lt.s32.totalorder %s26, 0
        %s296 = scalar_select %p295, %s26, 0
        %s297 = smul.addr %s296, 8
        %s298 = scalar_lea.vmem %s3, %s297
        %p299 = pneg %p122
        %p300 = pneg %p119
        %p301 = scmp.lt.s32.totalorder %s26, 0
        %s302 = scalar_select %p301, %s26, 0
        %s303 = scalar_lea.vmem %s4, %s302
        %p304 = pneg %p148
        %p305 = pneg %p145
        %s306 = smul.u32 16, %s26
        %p307 = scmp.lt.s32.totalorder %s306, 15
        %s308 = scalar_select %p307, %s306, 15
        %s309 = smul.addr %s308, 8
        %s310 = scalar_lea.vmem %s5, %s309
        %p311 = pneg %p174
        %p312 = pneg %p171
        %p313 = pneg %p195
        %p314 = pneg %p192
        %p315 = pneg %p221
        %p316 = pneg %p218
        %s317 = sand.u32 %s208, 1
        %s318 = scalar_lea.sflag [#allocation4], %s317
        %s319 = sand.u32 %s208, 1
        %s320 = smul.addr %s319, 8
        %s321 = scalar_lea.vmem [#allocation3], %s320
        %p322 = scmp.lt.s32.totalorder %s25, 1
        %s323 = scalar_select %p322, %s25, 1
        %s324 = smul.addr %s323, 8
        %s325 = scalar_lea.vmem %s0, %s324
        %p326 = scmp.lt.s32.totalorder %s26, 0
        %s327 = scalar_select %p326, %s26, 0
        %s328 = smul.addr %s327, 8
        %s329 = scalar_lea.vmem %s3, %s328
        %p330 = scmp.lt.s32.totalorder %s26, 0
        %s331 = scalar_select %p330, %s26, 0
        %s332 = scalar_lea.vmem %s4, %s331
        %s333 = smul.u32 16, %s26
        %p334 = scmp.lt.s32.totalorder %s333, 15
        %s335 = scalar_select %p334, %s333, 15
        %s336 = smul.addr %s335, 8
        %s337 = scalar_lea.vmem %s5, %s336
        %s338 = smul.u32 16, %s26
        %p339 = scmp.eq.s32.totalorder %s26, 0
        // Predicated region
        $region49: #{tpu_custom_call.1} parent=47 // pred_check
          %p340 = pneg %p339
        $region50: #{tpu_custom_call.1} parent=47 // pred_check_branch
          %342 = sbr.rel (%p340) target = $region52
        $region51: #{tpu_custom_call.1} parent=47 // pred_region
          %v343 = vld [vmem:[%s325] sm:$0xff]
          %vm344 = vcmask 261120
          %v345 = vsel %vm344, %v343, 0.0
          %346 = vadd.xlane.f32.xlu0 %v345
          %v347 = vpop.xlane.xlu0 %346
          %v348 = vrcp.pop 32.0
          %v349 = vmul.f32 %v347, %v348
          %v350 = vsub.f32 %v343, %v349
          %v351 = vmul.f32 %v350, %v350
          %v352 = vsel %vm344, %v351, 0.0
          %353 = vadd.xlane.f32.xlu0 %v352
          %v354 = vpop.xlane.xlu0 %353
          %v355 = vmul.f32 %v354, %v348
          %v356 = vadd.f32 %v355, 1e-12
          %v357 = vrsqrt.pop %v356
          %v358 = vmul.f32 %v350, %v357
          %v359 = vld [vmem:[%s1] sm:$0x1]
          %v361 = vlaneseq
          %v362 = vshrl.u32 %v361, 7
          %v363 = vsub.s32 0, %v362
          %v364 = vrot.slane %v359, %v363
          %v366 = vmul.f32 %v358, %v364
          %v367 = vld [vmem:[%s2] sm:$0x1]
          %v369 = vlaneseq
          %v370 = vshrl.u32 %v369, 7
          %v371 = vsub.s32 0, %v370
          %v372 = vrot.slane %v367, %v371
          %v374 = vadd.f32 %v366, %v372
          %375 = vst.msk [vmem:[#allocation2] sm:$0xff] %vm344, %v374
        $region52: #{tpu_custom_call.1} parent=47 // pred_fallthru
          _
        %v376 = vld [vmem:[#allocation2] sm:$0xff]
        %v377 = vld [vmem:[%s329] sm:$0xff]
        %v378 = vld [vmem:[%s329 + $0x8] sm:$0xff]
        %v379 = vld [vmem:[%s329 + $0x10] sm:$0xff]
        %v380 = vld [vmem:[%s329 + $0x18] sm:$0xff]
        %v381 = vld [vmem:[%s332] sm:$0x1]
        %v383 = vlaneseq
        %v384 = vshrl.u32 %v383, 7
        %v385 = vsub.s32 0, %v384
        %v386 = vrot.slane %v381, %v385
        %vm388 = vcmask 261120
        %v390 = vsel %vm388, %v376, 0
        %392 = vmatprep.subr.mxu0 0.0
        %393 = vmatpush1.msra.mxu0 %v377
        %394 = vmatprep.subr.mxu0 0.0
        %395 = vmatpush1.msra.mxu0 %v378
        %396 = vmatprep.subr.mxu0 0.0
        %397 = vmatpush1.msra.mxu0 %v379
        %398 = vmatprep.subr.mxu0 0.0
        %399 = vmatpush1.msra.mxu0 %v380
        %400 = vmatprep.subr.mxu0 0.0
        %401 = vmatpush1.msra.mxu0 0.0
        %402 = vmatprep.subr.mxu0 0.0
        %403 = vmatpush1.msra.mxu0 0.0
        %404 = vmatprep.subr.mxu0 0.0
        %405 = vmatpush1.msra.mxu0 0.0
        %406 = vmatprep.subr.mxu0 0.0
        %407 = vmatpush1.msra.mxu0 0.0
        %408 = vmatprep.subr.mxu0 0.0
        %409 = vmatpush1.msra.mxu0 0.0
        %410 = vmatprep.subr.mxu0 0.0
        %411 = vmatpush1.msra.mxu0 0.0
        %412 = vmatprep.subr.mxu0 0.0
        %413 = vmatpush1.msra.mxu0 0.0
        %414 = vmatprep.subr.mxu0 0.0
        %415 = vmatpush1.msra.mxu0 0.0
        %416 = vmatprep.subr.mxu0 0.0
        %417 = vmatpush1.msra.mxu0 0.0
        %418 = vmatprep.subr.mxu0 0.0
        %419 = vmatpush1.msra.mxu0 0.0
        %420 = vmatprep.subr.mxu0 0.0
        %421 = vmatpush1.msra.mxu0 0.0
        %422 = vmatprep.subr.mxu0 0.0
        %423 = vmatpush1.msra.mxu0 0.0
        %424 = vmatprep.subr.mxu0 0.0
        %425 = vmatpush1.msra.mxu0 0.0
        %426 = vmatprep.subr.mxu0 0.0
        %427 = vmatpush1.msra.mxu0 0.0
        %428 = vmatprep.subr.mxu0 0.0
        %429 = vmatpush1.msra.mxu0 0.0
        %430 = vmatprep.subr.mxu0 0.0
        %431 = vmatpush1.msra.mxu0 0.0
        %432 = vmatprep.subr.mxu0 0.0
        %433 = vmatpush1.msra.mxu0 0.0
        %434 = vmatprep.subr.mxu0 0.0
        %435 = vmatpush1.msra.mxu0 0.0
        %436 = vmatprep.subr.mxu0 0.0
        %437 = vmatpush1.msra.mxu0 0.0
        %438 = vmatprep.subr.mxu0 0.0
        %439 = vmatpush1.msra.mxu0 0.0
        %440 = vmatprep.subr.mxu0 0.0
        %441 = vmatpush1.msra.mxu0 0.0
        %442 = vmatprep.subr.mxu0 0.0
        %443 = vmatpush1.msra.mxu0 0.0
        %444 = vmatprep.subr.mxu0 0.0
        %445 = vmatpush1.msra.mxu0 0.0
        %446 = vmatprep.subr.mxu0 0.0
        %447 = vmatpush1.msra.mxu0 0.0
        %448 = vmatprep.subr.mxu0 0.0
        %449 = vmatpush1.msra.mxu0 0.0
        %450 = vmatprep.subr.mxu0 0.0
        %451 = vmatpush1.msra.mxu0 0.0
        %452 = vmatprep.subr.mxu0 0.0
        %453 = vmatpush1.msra.mxu0 0.0
        %454 = vmatprep.subr.mxu0 0.0
        %455 = vmatpush1.msra.mxu0 0.0
        %456 = vmatprep.mubr.f32.mxu0 0.0
        %457 = vmatmul.mubr.f32.gmra.mrb[0].mxu0 %v390
        %v458 = vpop.f32.mrb[0].mxu0
        %v459 = vadd.f32 %v386, %v458
        %v460 = vpop.f32.mrb[0].mxu0
        %461 = vdwg.mxu0
        %v462 = vmul.f32 %v459, 0.5
        %v463 = vmul.f32 %v459, 0.70710677
        %v464 = verf.f32.pop %v463
        %v465 = vadd.f32 %v464, 1.0
        %v466 = vmul.f32 %v462, %v465
        %v467 = vld [vmem:[%s337] sm:$0xff]
        %v468 = vld [vmem:[%s337 + $0x8] sm:$0xff]
        %v469 = vld [vmem:[%s337 + $0x10] sm:$0xff]
        %v470 = vld [vmem:[%s337 + $0x18] sm:$0xff]
        %v471 = vld [vmem:[%s337 + $0x20] sm:$0xff]
        %v472 = vld [vmem:[%s337 + $0x28] sm:$0xff]
        %v473 = vld [vmem:[%s337 + $0x30] sm:$0xff]
        %v474 = vld [vmem:[%s337 + $0x38] sm:$0xff]
        %v475 = vld [vmem:[%s337 + $0x40] sm:$0xff]
        %v476 = vld [vmem:[%s337 + $0x48] sm:$0xff]
        %v477 = vld [vmem:[%s337 + $0x50] sm:$0xff]
        %v478 = vld [vmem:[%s337 + $0x58] sm:$0xff]
        %v479 = vld [vmem:[%s337 + $0x60] sm:$0xff]
        %v480 = vld [vmem:[%s337 + $0x68] sm:$0xff]
        %v481 = vld [vmem:[%s337 + $0x70] sm:$0xff]
        %v482 = vld [vmem:[%s337 + $0x78] sm:$0xff]
        %483 = vmatprep.subr.mxu0 0.0
        %484 = vmatpush1.msra.mxu0 %v467
        %485 = vmatprep.subr.mxu0 0.0
        %486 = vmatpush1.msra.mxu0 %v468
        %487 = vmatprep.subr.mxu0 0.0
        %488 = vmatpush1.msra.mxu0 %v469
        %489 = vmatprep.subr.mxu0 0.0
        %490 = vmatpush1.msra.mxu0 %v470
        %491 = vmatprep.subr.mxu0 0.0
        %492 = vmatpush1.msra.mxu0 %v471
        %493 = vmatprep.subr.mxu0 0.0
        %494 = vmatpush1.msra.mxu0 %v472
        %495 = vmatprep.subr.mxu0 0.0
        %496 = vmatpush1.msra.mxu0 %v473
        %497 = vmatprep.subr.mxu0 0.0
        %498 = vmatpush1.msra.mxu0 %v474
        %499 = vmatprep.subr.mxu0 0.0
        %500 = vmatpush1.msra.mxu0 %v475
        %501 = vmatprep.subr.mxu0 0.0
        %502 = vmatpush1.msra.mxu0 %v476
        %503 = vmatprep.subr.mxu0 0.0
        %504 = vmatpush1.msra.mxu0 %v477
        %505 = vmatprep.subr.mxu0 0.0
        %506 = vmatpush1.msra.mxu0 %v478
        %507 = vmatprep.subr.mxu0 0.0
        %508 = vmatpush1.msra.mxu0 %v479
        %509 = vmatprep.subr.mxu0 0.0
        %510 = vmatpush1.msra.mxu0 %v480
        %511 = vmatprep.subr.mxu0 0.0
        %512 = vmatpush1.msra.mxu0 %v481
        %513 = vmatprep.subr.mxu0 0.0
        %514 = vmatpush1.msra.mxu0 %v482
        %515 = vmatprep.subr.mxu0 0.0
        %516 = vmatpush1.msra.mxu0 0.0
        %517 = vmatprep.subr.mxu0 0.0
        %518 = vmatpush1.msra.mxu0 0.0
        %519 = vmatprep.subr.mxu0 0.0
        %520 = vmatpush1.msra.mxu0 0.0
        %521 = vmatprep.subr.mxu0 0.0
        %522 = vmatpush1.msra.mxu0 0.0
        %523 = vmatprep.subr.mxu0 0.0
        %524 = vmatpush1.msra.mxu0 0.0
        %525 = vmatprep.subr.mxu0 0.0
        %526 = vmatpush1.msra.mxu0 0.0
        %527 = vmatprep.subr.mxu0 0.0
        %528 = vmatpush1.msra.mxu0 0.0
        %529 = vmatprep.subr.mxu0 0.0
        %530 = vmatpush1.msra.mxu0 0.0
        %531 = vmatprep.subr.mxu0 0.0
        %532 = vmatpush1.msra.mxu0 0.0
        %533 = vmatprep.subr.mxu0 0.0
        %534 = vmatpush1.msra.mxu0 0.0
        %535 = vmatprep.subr.mxu0 0.0
        %536 = vmatpush1.msra.mxu0 0.0
        %537 = vmatprep.subr.mxu0 0.0
        %538 = vmatpush1.msra.mxu0 0.0
        %539 = vmatprep.subr.mxu0 0.0
        %540 = vmatpush1.msra.mxu0 0.0
        %541 = vmatprep.subr.mxu0 0.0
        %542 = vmatpush1.msra.mxu0 0.0
        %543 = vmatprep.subr.mxu0 0.0
        %544 = vmatpush1.msra.mxu0 0.0
        %545 = vmatprep.subr.mxu0 0.0
        %546 = vmatpush1.msra.mxu0 0.0
        %547 = vmatprep.mubr.f32.mxu0 0.0
        %548 = vmatmul.mubr.f32.gmra.mrb[0].mxu0 %v466
        %v549 = vpop.f32.mrb[0].mxu0
        %v550 = vadd.f32 0.0, %v549
        %v551 = vpop.f32.mrb[0].mxu0
        %552 = vdwg.mxu0
        // Predicated region
        $region53: #{tpu_custom_call.1} parent=47 // pred_check
          %p553 = pneg %p339
        $region54: #{tpu_custom_call.1} parent=47 // pred_check_branch
          %555 = sbr.rel (%p553) target = $region56
        $region55: #{tpu_custom_call.1} parent=47 // pred_region
          %v556 = vld [vmem:[%s325] sm:$0xff]
          %v557 = vld [vmem:[%s6] sm:$0x1]
          %v559 = vlaneseq
          %v560 = vshrl.u32 %v559, 7
          %v561 = vsub.s32 0, %v560
          %v562 = vrot.slane %v557, %v561
          %v564 = vadd.f32 %v556, %v562
          %v565 = vadd.f32 %v564, %v550
          %566 = vst.msk [vmem:[%s321] sm:$0xff] %vm388, %v565
        $region56: #{tpu_custom_call.1} parent=47 // pred_fallthru
          _
        %p567 = scmp.gt.s32.totalorder %s26, 0
        // Predicated region
        $region57: #{tpu_custom_call.1} parent=47 // pred_check
          %p568 = pneg %p567
        $region58: #{tpu_custom_call.1} parent=47 // pred_check_branch
          %570 = sbr.rel (%p568) target = $region60
        $region59: #{tpu_custom_call.1} parent=47 // pred_region
          %v571 = vld [vmem:[%s321] sm:$0xff]
          %v572 = vadd.f32 %v571, %v550
          %573 = vst.msk [vmem:[%s321] sm:$0xff] %vm388, %v572
        $region60: #{tpu_custom_call.1} parent=47 // pred_fallthru
          _
        %s574 = sand.u32 %s208, 1
        %s575 = scalar_lea.sflag [#allocation4], %s574
        %s576 = sand.u32 %s208, 1
        %s577 = smul.addr %s576, 8
        %s578 = scalar_lea.vmem [#allocation3], %s577
        // Predicated region
        $region61: #{tpu_custom_call.1} parent=47 // pred_check
          %p579 = pneg %p218
        $region62: #{tpu_custom_call.1} parent=47 // pred_check_branch
          %581 = sbr.rel (%p579) target = $region64
        $region63: #{tpu_custom_call.1} parent=47 // pred_region
          %s583 = ssub.s32 128, 128
          %584 = vsyncadd %s575, %s583
          %s585 = smul.addr %s25, 128
          %s586 = scalar_lea.hbm %s7, %s585
          %s588 = sshll.u32 %s578, 4
          %s589 = int_to_ptr.vmem [resolvable:$true] %s588
          %591 = dma.vmem_to_hbm [thread:$0]  %s589, 128, %s586, %s575
        $region64: #{tpu_custom_call.1} parent=47 // pred_fallthru
          _
      $region48: #{tpu_custom_call.1} parent=5 // pred_fallthru
        _
      %p592 = scmp.le.s32.totalorder 2, %s16
      // Predicated region
      $region65: #{tpu_custom_call.1} parent=5 // pred_check
        %p593 = pneg %p592
      $region66: #{tpu_custom_call.1} parent=5 // pred_check_branch
        %595 = sbr.rel (%p593) target = $region68
      $region67: #{tpu_custom_call.1} parent=5 // pred_region
        %s596 = ssub.s32 %s16, 2
        // Predicated region
        $region69: #{tpu_custom_call.1} parent=67 // pred_check
          %p597 = pneg %p224
        $region70: #{tpu_custom_call.1} parent=67 // pred_check_branch
          %599 = sbr.rel (%p597) target = $region72
        $region71: #{tpu_custom_call.1} parent=67 // pred_region
          %s600 = sand.u32 %s209, 1
          %s601 = scalar_lea.sflag [#allocation4], %s600
          %s602 = sand.u32 %s209, 1
          %s603 = smul.addr %s602, 8
          %s604 = scalar_lea.vmem [#allocation3], %s603
          %605 = dma.done %s601, 128
        $region72: #{tpu_custom_call.1} parent=67 // pred_fallthru
          _
      $region68: #{tpu_custom_call.1} parent=5 // pred_fallthru
        _
    $region6: #{tpu_custom_call.1} parent=1 // loop_footer
      %s20 = sadd.s32 1, %s16
    $region7: #{tpu_custom_call.1} parent=1 // loop_footer_branch
      %15 = sbr.rel target = $region3
    $region8: #{tpu_custom_call.1} parent=1 // loop_exit
      _
    %606 = vsyncpa [#allocation4], 1
    %s607 = scalar_lea.sflag [#allocation4], 1
    %608 = vsyncpa %s607, 1

// kernel: tpu_custom_call.1
$region0: #{tpu_custom_call.1}
  #allocation0 [shape = 'u32[]', space=smem, size = 0x4, offset = 0x4, fixed_abs, tag = 'smem constant byte address 0x4 - core index']
  #allocation1 [shape = 'u32[144,128]{1,0:T(1,128)}', space=vmem, size = 0x12000, scoped, tag = 'internal scratch']
  #allocation2 [shape = 'f32[8,32]{1,0:T(8,128)}', space=vmem, size = 0x1000, scoped, tag = 'scratch operand']
  %s0 = inlined_call_operand.vmem [shape: f32[16,32], index: 0, kind: input, shape index: {}]
  %s1 = inlined_call_operand.vmem [shape: f32[1,32], index: 1, kind: input, shape index: {}]
  %s2 = inlined_call_operand.vmem [shape: f32[1,32], index: 2, kind: input, shape index: {}]
  %s3 = inlined_call_operand.vmem [shape: f32[32,128], index: 3, kind: input, shape index: {}]
  %s4 = inlined_call_operand.vmem [shape: f32[1,128], index: 4, kind: input, shape index: {}]
  %s5 = inlined_call_operand.vmem [shape: f32[128,32], index: 5, kind: input, shape index: {}]
  %s6 = inlined_call_operand.vmem [shape: f32[1,32], index: 6, kind: input, shape index: {}]
  %s7 = inlined_call_operand.hbm [shape: f32[16,32], index: 7, kind: output, shape index: {}]
  %s8 = sld [smem:[#allocation0]]
  $region73: #{tpu_custom_call.1} parent=0
    _
  %s10 = ssub.s32 1, %s8
  %s11 = scalar_select 0, %s10, %s8
  $region1: #{tpu_custom_call.1} parent=0
    #allocation3 [shape = 'u8[8192]{0}', space=vmem, size = 0x2000, scoped, tag = 'output window, operand 0']
    #allocation4 [shape = 's32[2]{0}', space=sflag, size = 0x8, scoped, tag = 'scoped memory for tpu_custom_call.1']
    %12 = vsyncpa [#allocation4], 0
    %s13 = scalar_lea.sflag [#allocation4], 1
    %14 = vsyncpa %s13, 0
    loop: start=0, step=1, limit=4
    $region2: #{tpu_custom_call.1} parent=1 // loop_pre_header
      _
    $region3: #{tpu_custom_call.1} parent=1 // loop_header
      %s16 = sphi 0, %s20
      %p17 = scmp.ge.s32.totalorder %s16, 4
      %s23 = sphi 0, %s35
      %s24 = sphi 0, %s31
      %s25 = sphi 0, %s23
      %s26 = sphi 0, %s24
      %s27 = sphi 0, %s25
      %s28 = sphi 0, %s26
      %s38 = sphi 0, %s40
      %s41 = sphi 0, %s38
      %s42 = sphi 0, %s41
      %s58 = sphi 0, %s42
      %s62 = sphi 0, %s62
      %s64 = sphi 0, %s62
      %s65 = sphi 0, %s64
      %s79 = sphi 0, %s65
      %s83 = sphi 0, %s83
      %s85 = sphi 0, %s83
      %s86 = sphi 0, %s85
      %s100 = sphi 0, %s86
      %s106 = sphi 0, %s108
      %s109 = sphi 0, %s106
      %s110 = sphi 0, %s109
      %s126 = sphi 0, %s110
      %s132 = sphi 0, %s134
      %s135 = sphi 0, %s132
      %s136 = sphi 0, %s135
      %s152 = sphi 0, %s136
      %s158 = sphi 0, %s160
      %s161 = sphi 0, %s158
      %s162 = sphi 0, %s161
      %s178 = sphi 0, %s162
      %s182 = sphi 0, %s182
      %s184 = sphi 0, %s182
      %s185 = sphi 0, %s184
      %s199 = sphi 0, %s185
      %s205 = sphi 0, %s207
      %s208 = sphi 0, %s205
      %s209 = sphi 0, %s208
      %s225 = sphi 0, %s209
    $region4: #{tpu_custom_call.1} parent=1 // loop_header_branch
      %19 = sbr.rel (%p17) target = $region8
    $region5: #{tpu_custom_call.1} parent=1 // loop_body
      %s21 = ssub.s32 %s16, 1
      %s22 = ssub.s32 %s16, 2
      %s29 = sadd.s32 1, %s24
      %p30 = scmp.ge.s32.totalorder %s29, 1
      %s31 = scalar_select %p30, 0, %s29
      %s32 = sadd.s32 1, %s23
      %s33 = scalar_select %p30, %s32, %s23
      %p34 = scmp.ge.s32.totalorder %s33, 2
      %s35 = scalar_select %p34, 0, %s33
      %s36 = ssub.s32 %s23, %s35
      %p37 = scmp.eq.s32.totalorder %s36, 0
      %s39 = sadd.s32 %s38, 1
      %s40 = scalar_select %p37, %s38, %s39
      %p43 = pneg %p37
      %p44 = scmp.eq.s32.totalorder %s16, 1
      %p45 = por %p43, %p44
      %p46 = scmp.ne.s32.totalorder %s38, %s41
      %p47 = scmp.eq.s32.totalorder %s16, 0
      %p48 = por %p46, %p47
      %p49 = scmp.ne.s32.totalorder %s38, %s41
      %p50 = scmp.eq.s32.totalorder %s21, 1
      %p51 = por %p49, %p50
      %p52 = scmp.ne.s32.totalorder %s41, %s42
      %p53 = scmp.eq.s32.totalorder %s21, 0
      %p54 = por %p52, %p53
      %p55 = scmp.ne.s32.totalorder %s41, %s42
      %p56 = scmp.eq.s32.totalorder %s22, 1
      %p57 = por %p55, %p56
      %p59 = scmp.ne.s32.totalorder %s42, %s58
      %p60 = scmp.eq.s32.totalorder %s22, 0
      %p61 = por %p59, %p60
      %s63 = sadd.s32 %s62, 1
      %p66 = scmp.eq.s32.totalorder %s16, 1
      %p67 = scmp.ne.s32.totalorder %s62, %s64
      %p68 = scmp.eq.s32.totalorder %s16, 0
      %p69 = por %p67, %p68
      %p70 = scmp.ne.s32.totalorder %s62, %s64
      %p71 = scmp.eq.s32.totalorder %s21, 1
      %p72 = por %p70, %p71
      %p73 = scmp.ne.s32.totalorder %s64, %s65
      %p74 = scmp.eq.s32.totalorder %s21, 0
      %p75 = por %p73, %p74
      %p76 = scmp.ne.s32.totalorder %s64, %s65
      %p77 = scmp.eq.s32.totalorder %s22, 1
      %p78 = por %p76, %p77
      %p80 = scmp.ne.s32.totalorder %s65, %s79
      %p81 = scmp.eq.s32.totalorder %s22, 0
      %p82 = por %p80, %p81
      %s84 = sadd.s32 %s83, 1
      %p87 = scmp.eq.s32.totalorder %s16, 1
      %p88 = scmp.ne.s32.totalorder %s83, %s85
      %p89 = scmp.eq.s32.totalorder %s16, 0
      %p90 = por %p88, %p89
      %p91 = scmp.ne.s32.totalorder %s83, %s85
      %p92 = scmp.eq.s32.totalorder %s21, 1
      %p93 = por %p91, %p92
      %p94 = scmp.ne.s32.totalorder %s85, %s86
      %p95 = scmp.eq.s32.totalorder %s21, 0
      %p96 = por %p94, %p95
      %p97 = scmp.ne.s32.totalorder %s85, %s86
      %p98 = scmp.eq.s32.totalorder %s22, 1
      %p99 = por %p97, %p98
      %p101 = scmp.ne.s32.totalorder %s86, %s100
      %p102 = scmp.eq.s32.totalorder %s22, 0
      %p103 = por %p101, %p102
      %s104 = ssub.s32 %s24, %s31
      %p105 = scmp.eq.s32.totalorder %s104, 0
      %s107 = sadd.s32 %s106, 1
      %s108 = scalar_select %p105, %s106, %s107
      %p111 = pneg %p105
      %p112 = scmp.eq.s32.totalorder %s16, 1
      %p113 = por %p111, %p112
      %p114 = scmp.ne.s32.totalorder %s106, %s109
      %p115 = scmp.eq.s32.totalorder %s16, 0
      %p116 = por %p114, %p115
      %p117 = scmp.ne.s32.totalorder %s106, %s109
      %p118 = scmp.eq.s32.totalorder %s21, 1
      %p119 = por %p117, %p118
      %p120 = scmp.ne.s32.totalorder %s109, %s110
      %p121 = scmp.eq.s32.totalorder %s21, 0
      %p122 = por %p120, %p121
      %p123 = scmp.ne.s32.totalorder %s109, %s110
      %p124 = scmp.eq.s32.totalorder %s22, 1
      %p125 = por %p123, %p124
      %p127 = scmp.ne.s32.totalorder %s110, %s126
      %p128 = scmp.eq.s32.totalorder %s22, 0
      %p129 = por %p127, %p128
      %s130 = ssub.s32 %s24, %s31
      %p131 = scmp.eq.s32.totalorder %s130, 0
      %s133 = sadd.s32 %s132, 1
      %s134 = scalar_select %p131, %s132, %s133
      %p137 = pneg %p131
      %p138 = scmp.eq.s32.totalorder %s16, 1
      %p139 = por %p137, %p138
      %p140 = scmp.ne.s32.totalorder %s132, %s135
      %p141 = scmp.eq.s32.totalorder %s16, 0
      %p142 = por %p140, %p141
      %p143 = scmp.ne.s32.totalorder %s132, %s135
      %p144 = scmp.eq.s32.totalorder %s21, 1
      %p145 = por %p143, %p144
      %p146 = scmp.ne.s32.totalorder %s135, %s136
      %p147 = scmp.eq.s32.totalorder %s21, 0
      %p148 = por %p146, %p147
      %p149 = scmp.ne.s32.totalorder %s135, %s136
      %p150 = scmp.eq.s32.totalorder %s22, 1
      %p151 = por %p149, %p150
      %p153 = scmp.ne.s32.totalorder %s136, %s152
      %p154 = scmp.eq.s32.totalorder %s22, 0
      %p155 = por %p153, %p154
      %s156 = ssub.s32 %s24, %s31
      %p157 = scmp.eq.s32.totalorder %s156, 0
      %s159 = sadd.s32 %s158, 1
      %s160 = scalar_select %p157, %s158, %s159
      %p163 = pneg %p157
      %p164 = scmp.eq.s32.totalorder %s16, 1
      %p165 = por %p163, %p164
      %p166 = scmp.ne.s32.totalorder %s158, %s161
      %p167 = scmp.eq.s32.totalorder %s16, 0
      %p168 = por %p166, %p167
      %p169 = scmp.ne.s32.totalorder %s158, %s161
      %p170 = scmp.eq.s32.totalorder %s21, 1
      %p171 = por %p169, %p170
      %p172 = scmp.ne.s32.totalorder %s161, %s162
      %p173 = scmp.eq.s32.totalorder %s21, 0
      %p174 = por %p172, %p173
      %p175 = scmp.ne.s32.totalorder %s161, %s162
      %p176 = scmp.eq.s32.totalorder %s22, 1
      %p177 = por %p175, %p176
      %p179 = scmp.ne.s32.totalorder %s162, %s178
      %p180 = scmp.eq.s32.totalorder %s22, 0
      %p181 = por %p179, %p180
      %s183 = sadd.s32 %s182, 1
      %p186 = scmp.eq.s32.totalorder %s16, 1
      %p187 = scmp.ne.s32.totalorder %s182, %s184
      %p188 = scmp.eq.s32.totalorder %s16, 0
      %p189 = por %p187, %p188
      %p190 = scmp.ne.s32.totalorder %s182, %s184
      %p191 = scmp.eq.s32.totalorder %s21, 1
      %p192 = por %p190, %p191
      %p193 = scmp.ne.s32.totalorder %s184, %s185
      %p194 = scmp.eq.s32.totalorder %s21, 0
      %p195 = por %p193, %p194
      %p196 = scmp.ne.s32.totalorder %s184, %s185
      %p197 = scmp.eq.s32.totalorder %s22, 1
      %p198 = por %p196, %p197
      %p200 = scmp.ne.s32.totalorder %s185, %s199
      %p201 = scmp.eq.s32.totalorder %s22, 0
      %p202 = por %p200, %p201
      %s203 = ssub.s32 %s23, %s35
      %p204 = scmp.eq.s32.totalorder %s203, 0
      %s206 = sadd.s32 %s205, 1
      %s207 = scalar_select %p204, %s205, %s206
      %p210 = pneg %p204
      %p211 = scmp.eq.s32.totalorder %s16, 1
      %p212 = por %p210, %p211
      %p213 = scmp.ne.s32.totalorder %s205, %s208
      %p214 = scmp.eq.s32.totalorder %s16, 0
      %p215 = por %p213, %p214
      %p216 = scmp.ne.s32.totalorder %s205, %s208
      %p217 = scmp.eq.s32.totalorder %s21, 1
      %p218 = por %p216, %p217
      %p219 = scmp.ne.s32.totalorder %s208, %s209
      %p220 = scmp.eq.s32.totalorder %s21, 0
      %p221 = por %p219, %p220
      %p222 = scmp.ne.s32.totalorder %s208, %s209
      %p223 = scmp.eq.s32.totalorder %s22, 1
      %p224 = por %p222, %p223
      %p226 = scmp.ne.s32.totalorder %s209, %s225
      %p227 = scmp.eq.s32.totalorder %s22, 0
      %p228 = por %p226, %p227
      %p229 = scmp.le.s32.totalorder 1, %s16
      %p230 = scmp.lt.s32.totalorder %s16, 3
      %p231 = pnand %p229, %p230
      %p232 = pneg %p231
      // Predicated region
      $region9: #{tpu_custom_call.1} parent=5 // pred_check
        _
      $region10: #{tpu_custom_call.1} parent=5 // pred_check_branch
        %234 = sbr.rel (%p231) target = $region12
      $region11: #{tpu_custom_call.1} parent=5 // pred_region
        %s235 = ssub.s32 %s16, 1
        // Predicated region
        $region13: #{tpu_custom_call.1} parent=11 // pred_check
          %p236 = pneg %p75
        $region14: #{tpu_custom_call.1} parent=11 // pred_check_branch
          %238 = sbr.rel (%p236) target = $region16
        $region15: #{tpu_custom_call.1} parent=11 // pred_region
          _
        $region16: #{tpu_custom_call.1} parent=11 // pred_fallthru
          _
        // Predicated region
        $region17: #{tpu_custom_call.1} parent=11 // pred_check
          %p239 = pneg %p96
        $region18: #{tpu_custom_call.1} parent=11 // pred_check_branch
          %241 = sbr.rel (%p239) target = $region20
        $region19: #{tpu_custom_call.1} parent=11 // pred_region
          _
        $region20: #{tpu_custom_call.1} parent=11 // pred_fallthru
          _
        // Predicated region
        $region21: #{tpu_custom_call.1} parent=11 // pred_check
          %p242 = pneg %p122
        $region22: #{tpu_custom_call.1} parent=11 // pred_check_branch
          %244 = sbr.rel (%p242) target = $region24
        $region23: #{tpu_custom_call.1} parent=11 // pred_region
          %p245 = scmp.lt.s32.totalorder %s26, 0
          %s246 = scalar_select %p245, %s26, 0
          %s247 = smul.addr %s246, 8
          %s248 = scalar_lea.vmem %s3, %s247
        $region24: #{tpu_custom_call.1} parent=11 // pred_fallthru
          _
        // Predicated region
        $region25: #{tpu_custom_call.1} parent=11 // pred_check
          %p249 = pneg %p148
        $region26: #{tpu_custom_call.1} parent=11 // pred_check_branch
          %251 = sbr.rel (%p249) target = $region28
        $region27: #{tpu_custom_call.1} parent=11 // pred_region
          %p252 = scmp.lt.s32.totalorder %s26, 0
          %s253 = scalar_select %p252, %s26, 0
          %s254 = scalar_lea.vmem %s4, %s253
        $region28: #{tpu_custom_call.1} parent=11 // pred_fallthru
          _
        // Predicated region
        $region29: #{tpu_custom_call.1} parent=11 // pred_check
          %p255 = pneg %p174
        $region30: #{tpu_custom_call.1} parent=11 // pred_check_branch
          %257 = sbr.rel (%p255) target = $region32
        $region31: #{tpu_custom_call.1} parent=11 // pred_region
          %s258 = smul.u32 16, %s26
          %p259 = scmp.lt.s32.totalorder %s258, 15
          %s260 = scalar_select %p259, %s258, 15
          %s261 = smul.addr %s260, 8
          %s262 = scalar_lea.vmem %s5, %s261
          %s263 = smul.u32 16, %s26
        $region32: #{tpu_custom_call.1} parent=11 // pred_fallthru
          _
        // Predicated region
        $region33: #{tpu_custom_call.1} parent=11 // pred_check
          %p264 = pneg %p195
        $region34: #{tpu_custom_call.1} parent=11 // pred_check_branch
          %266 = sbr.rel (%p264) target = $region36
        $region35: #{tpu_custom_call.1} parent=11 // pred_region
          _
        $region36: #{tpu_custom_call.1} parent=11 // pred_fallthru
          _
      $region12: #{tpu_custom_call.1} parent=5 // pred_fallthru
        _
      %p267 = scmp.lt.s32.totalorder %s16, 2
      // Predicated region
      $region37: #{tpu_custom_call.1} parent=5 // pred_check
        %p268 = pneg %p267
      $region38: #{tpu_custom_call.1} parent=5 // pred_check_branch
        %270 = sbr.rel (%p268) target = $region40
      $region39: #{tpu_custom_call.1} parent=5 // pred_region
        // Predicated region
        $region41: #{tpu_custom_call.1} parent=39 // pred_check
          %p271 = pneg %p48
        $region42: #{tpu_custom_call.1} parent=39 // pred_check_branch
          %273 = sbr.rel (%p271) target = $region44
        $region43: #{tpu_custom_call.1} parent=39 // pred_region
          %p274 = scmp.lt.s32.totalorder %s23, 1
          %s275 = scalar_select %p274, %s23, 1
          %s276 = smul.addr %s275, 8
          %s277 = scalar_lea.vmem %s0, %s276
        $region44: #{tpu_custom_call.1} parent=39 // pred_fallthru
          _
      $region40: #{tpu_custom_call.1} parent=5 // pred_fallthru
        _
      %p278 = scmp.le.s32.totalorder 1, %s16
      %p279 = scmp.lt.s32.totalorder %s16, 3
      %p280 = pnand %p278, %p279
      %p281 = pneg %p280
      // Predicated region
      $region45: #{tpu_custom_call.1} parent=5 // pred_check
        _
      $region46: #{tpu_custom_call.1} parent=5 // pred_check_branch
        %283 = sbr.rel (%p280) target = $region48
      $region47: #{tpu_custom_call.1} parent=5 // pred_region
        %s284 = ssub.s32 %s16, 1
        %p285 = scmp.lt.s32.totalorder %s25, 1
        %s286 = scalar_select %p285, %s25, 1
        %s287 = smul.addr %s286, 8
        %s288 = scalar_lea.vmem %s0, %s287
        %p289 = pneg %p54
        %p290 = pneg %p51
        %p291 = pneg %p75
        %p292 = pneg %p72
        %p293 = pneg %p96
        %p294 = pneg %p93
        %p295 = scmp.lt.s32.totalorder %s26, 0
        %s296 = scalar_select %p295, %s26, 0
        %s297 = smul.addr %s296, 8
        %s298 = scalar_lea.vmem %s3, %s297
        %p299 = pneg %p122
        %p300 = pneg %p119
        %p301 = scmp.lt.s32.totalorder %s26, 0
        %s302 = scalar_select %p301, %s26, 0
        %s303 = scalar_lea.vmem %s4, %s302
        %p304 = pneg %p148
        %p305 = pneg %p145
        %s306 = smul.u32 16, %s26
        %p307 = scmp.lt.s32.totalorder %s306, 15
        %s308 = scalar_select %p307, %s306, 15
        %s309 = smul.addr %s308, 8
        %s310 = scalar_lea.vmem %s5, %s309
        %p311 = pneg %p174
        %p312 = pneg %p171
        %p313 = pneg %p195
        %p314 = pneg %p192
        %p315 = pneg %p221
        %p316 = pneg %p218
        %s317 = sand.u32 %s208, 1
        %s318 = scalar_lea.sflag [#allocation4], %s317
        %s319 = sand.u32 %s208, 1
        %s320 = smul.addr %s319, 8
        %s321 = scalar_lea.vmem [#allocation3], %s320
        %p322 = scmp.lt.s32.totalorder %s25, 1
        %s323 = scalar_select %p322, %s25, 1
        %s324 = smul.addr %s323, 8
        %s325 = scalar_lea.vmem %s0, %s324
        %p326 = scmp.lt.s32.totalorder %s26, 0
        %s327 = scalar_select %p326, %s26, 0
        %s328 = smul.addr %s327, 8
        %s329 = scalar_lea.vmem %s3, %s328
        %p330 = scmp.lt.s32.totalorder %s26, 0
        %s331 = scalar_select %p330, %s26, 0
        %s332 = scalar_lea.vmem %s4, %s331
        %s333 = smul.u32 16, %s26
        %p334 = scmp.lt.s32.totalorder %s333, 15
        %s335 = scalar_select %p334, %s333, 15
        %s336 = smul.addr %s335, 8
        %s337 = scalar_lea.vmem %s5, %s336
        %s338 = smul.u32 16, %s26
        %p339 = scmp.eq.s32.totalorder %s26, 0
        // Predicated region
        $region49: #{tpu_custom_call.1} parent=47 // pred_check
          %p340 = pneg %p339
        $region50: #{tpu_custom_call.1} parent=47 // pred_check_branch
          %342 = sbr.rel (%p340) target = $region52
        $region51: #{tpu_custom_call.1} parent=47 // pred_region
          %v343 = vld [vmem:[%s325] sm:$0xff]
          %vm344 = vcmask 261120
          %v345 = vsel %vm344, %v343, 0.0
          %346 = vadd.xlane.f32.xlu0 %v345
          %v347 = vpop.xlane.xlu0 %346
          %v348 = vrcp.pop 32.0
          %v349 = vmul.f32 %v347, %v348
          %v350 = vsub.f32 %v343, %v349
          %v351 = vmul.f32 %v350, %v350
          %v352 = vsel %vm344, %v351, 0.0
          %353 = vadd.xlane.f32.xlu0 %v352
          %v354 = vpop.xlane.xlu0 %353
          %v355 = vmul.f32 %v354, %v348
          %v356 = vadd.f32 %v355, 1e-12
          %v357 = vrsqrt.pop %v356
          %v358 = vmul.f32 %v350, %v357
          %v359 = vld [vmem:[%s1] sm:$0x1]
          %v361 = vlaneseq
          %v362 = vshrl.u32 %v361, 7
          %v363 = vsub.s32 0, %v362
          %v364 = vrot.slane %v359, %v363
          %v366 = vmul.f32 %v358, %v364
          %v367 = vld [vmem:[%s2] sm:$0x1]
          %v369 = vlaneseq
          %v370 = vshrl.u32 %v369, 7
          %v371 = vsub.s32 0, %v370
          %v372 = vrot.slane %v367, %v371
          %v374 = vadd.f32 %v366, %v372
          %375 = vst.msk [vmem:[#allocation2] sm:$0xff] %vm344, %v374
        $region52: #{tpu_custom_call.1} parent=47 // pred_fallthru
          _
        %v376 = vld [vmem:[#allocation2] sm:$0xff]
        %v377 = vld [vmem:[%s329] sm:$0xff]
        %v378 = vld [vmem:[%s329 + $0x8] sm:$0xff]
        %v379 = vld [vmem:[%s329 + $0x10] sm:$0xff]
        %v380 = vld [vmem:[%s329 + $0x18] sm:$0xff]
        %v381 = vld [vmem:[%s332] sm:$0x1]
        %v383 = vlaneseq
        %v384 = vshrl.u32 %v383, 7
        %v385 = vsub.s32 0, %v384
        %v386 = vrot.slane %v381, %v385
        %vm388 = vcmask 261120
        %v390 = vsel %vm388, %v376, 0
        %392 = vmatprep.subr.mxu0 0.0
        %393 = vmatpush1.msra.mxu0 %v377
        %394 = vmatprep.subr.mxu0 0.0
        %395 = vmatpush1.msra.mxu0 %v378
        %396 = vmatprep.subr.mxu0 0.0
        %397 = vmatpush1.msra.mxu0 %v379
        %398 = vmatprep.subr.mxu0 0.0
        %399 = vmatpush1.msra.mxu0 %v380
        %400 = vmatprep.subr.mxu0 0.0
        %401 = vmatpush1.msra.mxu0 0.0
        %402 = vmatprep.subr.mxu0 0.0
        %403 = vmatpush1.msra.mxu0 0.0
        %404 = vmatprep.subr.mxu0 0.0
        %405 = vmatpush1.msra.mxu0 0.0
        %406 = vmatprep.subr.mxu0 0.0
        %407 = vmatpush1.msra.mxu0 0.0
        %408 = vmatprep.subr.mxu0 0.0
        %409 = vmatpush1.msra.mxu0 0.0
        %410 = vmatprep.subr.mxu0 0.0
        %411 = vmatpush1.msra.mxu0 0.0
        %412 = vmatprep.subr.mxu0 0.0
        %413 = vmatpush1.msra.mxu0 0.0
        %414 = vmatprep.subr.mxu0 0.0
        %415 = vmatpush1.msra.mxu0 0.0
        %416 = vmatprep.subr.mxu0 0.0
        %417 = vmatpush1.msra.mxu0 0.0
        %418 = vmatprep.subr.mxu0 0.0
        %419 = vmatpush1.msra.mxu0 0.0
        %420 = vmatprep.subr.mxu0 0.0
        %421 = vmatpush1.msra.mxu0 0.0
        %422 = vmatprep.subr.mxu0 0.0
        %423 = vmatpush1.msra.mxu0 0.0
        %424 = vmatprep.subr.mxu0 0.0
        %425 = vmatpush1.msra.mxu0 0.0
        %426 = vmatprep.subr.mxu0 0.0
        %427 = vmatpush1.msra.mxu0 0.0
        %428 = vmatprep.subr.mxu0 0.0
        %429 = vmatpush1.msra.mxu0 0.0
        %430 = vmatprep.subr.mxu0 0.0
        %431 = vmatpush1.msra.mxu0 0.0
        %432 = vmatprep.subr.mxu0 0.0
        %433 = vmatpush1.msra.mxu0 0.0
        %434 = vmatprep.subr.mxu0 0.0
        %435 = vmatpush1.msra.mxu0 0.0
        %436 = vmatprep.subr.mxu0 0.0
        %437 = vmatpush1.msra.mxu0 0.0
        %438 = vmatprep.subr.mxu0 0.0
        %439 = vmatpush1.msra.mxu0 0.0
        %440 = vmatprep.subr.mxu0 0.0
        %441 = vmatpush1.msra.mxu0 0.0
        %442 = vmatprep.subr.mxu0 0.0
        %443 = vmatpush1.msra.mxu0 0.0
        %444 = vmatprep.subr.mxu0 0.0
        %445 = vmatpush1.msra.mxu0 0.0
        %446 = vmatprep.subr.mxu0 0.0
        %447 = vmatpush1.msra.mxu0 0.0
        %448 = vmatprep.subr.mxu0 0.0
        %449 = vmatpush1.msra.mxu0 0.0
        %450 = vmatprep.subr.mxu0 0.0
        %451 = vmatpush1.msra.mxu0 0.0
        %452 = vmatprep.subr.mxu0 0.0
        %453 = vmatpush1.msra.mxu0 0.0
        %454 = vmatprep.subr.mxu0 0.0
        %455 = vmatpush1.msra.mxu0 0.0
        %456 = vmatprep.mubr.f32.mxu0 0.0
        %457 = vmatmul.mubr.f32.gmra.mrb[0].mxu0 %v390
        %v458 = vpop.f32.mrb[0].mxu0
        %v459 = vadd.f32 %v386, %v458
        %v460 = vpop.f32.mrb[0].mxu0
        %461 = vdwg.mxu0
        %v462 = vmul.f32 %v459, 0.5
        %v463 = vmul.f32 %v459, 0.70710677
        %v464 = verf.f32.pop %v463
        %v465 = vadd.f32 %v464, 1.0
        %v466 = vmul.f32 %v462, %v465
        %v467 = vld [vmem:[%s337] sm:$0xff]
        %v468 = vld [vmem:[%s337 + $0x8] sm:$0xff]
        %v469 = vld [vmem:[%s337 + $0x10] sm:$0xff]
        %v470 = vld [vmem:[%s337 + $0x18] sm:$0xff]
        %v471 = vld [vmem:[%s337 + $0x20] sm:$0xff]
        %v472 = vld [vmem:[%s337 + $0x28] sm:$0xff]
        %v473 = vld [vmem:[%s337 + $0x30] sm:$0xff]
        %v474 = vld [vmem:[%s337 + $0x38] sm:$0xff]
        %v475 = vld [vmem:[%s337 + $0x40] sm:$0xff]
        %v476 = vld [vmem:[%s337 + $0x48] sm:$0xff]
        %v477 = vld [vmem:[%s337 + $0x50] sm:$0xff]
        %v478 = vld [vmem:[%s337 + $0x58] sm:$0xff]
        %v479 = vld [vmem:[%s337 + $0x60] sm:$0xff]
        %v480 = vld [vmem:[%s337 + $0x68] sm:$0xff]
        %v481 = vld [vmem:[%s337 + $0x70] sm:$0xff]
        %v482 = vld [vmem:[%s337 + $0x78] sm:$0xff]
        %483 = vmatprep.subr.mxu0 0.0
        %484 = vmatpush1.msra.mxu0 %v467
        %485 = vmatprep.subr.mxu0 0.0
        %486 = vmatpush1.msra.mxu0 %v468
        %487 = vmatprep.subr.mxu0 0.0
        %488 = vmatpush1.msra.mxu0 %v469
        %489 = vmatprep.subr.mxu0 0.0
        %490 = vmatpush1.msra.mxu0 %v470
        %491 = vmatprep.subr.mxu0 0.0
        %492 = vmatpush1.msra.mxu0 %v471
        %493 = vmatprep.subr.mxu0 0.0
        %494 = vmatpush1.msra.mxu0 %v472
        %495 = vmatprep.subr.mxu0 0.0
        %496 = vmatpush1.msra.mxu0 %v473
        %497 = vmatprep.subr.mxu0 0.0
        %498 = vmatpush1.msra.mxu0 %v474
        %499 = vmatprep.subr.mxu0 0.0
        %500 = vmatpush1.msra.mxu0 %v475
        %501 = vmatprep.subr.mxu0 0.0
        %502 = vmatpush1.msra.mxu0 %v476
        %503 = vmatprep.subr.mxu0 0.0
        %504 = vmatpush1.msra.mxu0 %v477
        %505 = vmatprep.subr.mxu0 0.0
        %506 = vmatpush1.msra.mxu0 %v478
        %507 = vmatprep.subr.mxu0 0.0
        %508 = vmatpush1.msra.mxu0 %v479
        %509 = vmatprep.subr.mxu0 0.0
        %510 = vmatpush1.msra.mxu0 %v480
        %511 = vmatprep.subr.mxu0 0.0
        %512 = vmatpush1.msra.mxu0 %v481
        %513 = vmatprep.subr.mxu0 0.0
        %514 = vmatpush1.msra.mxu0 %v482
        %515 = vmatprep.subr.mxu0 0.0
        %516 = vmatpush1.msra.mxu0 0.0
        %517 = vmatprep.subr.mxu0 0.0
        %518 = vmatpush1.msra.mxu0 0.0
        %519 = vmatprep.subr.mxu0 0.0
        %520 = vmatpush1.msra.mxu0 0.0
        %521 = vmatprep.subr.mxu0 0.0
        %522 = vmatpush1.msra.mxu0 0.0
        %523 = vmatprep.subr.mxu0 0.0
        %524 = vmatpush1.msra.mxu0 0.0
        %525 = vmatprep.subr.mxu0 0.0
        %526 = vmatpush1.msra.mxu0 0.0
        %527 = vmatprep.subr.mxu0 0.0
        %528 = vmatpush1.msra.mxu0 0.0
        %529 = vmatprep.subr.mxu0 0.0
        %530 = vmatpush1.msra.mxu0 0.0
        %531 = vmatprep.subr.mxu0 0.0
        %532 = vmatpush1.msra.mxu0 0.0
        %533 = vmatprep.subr.mxu0 0.0
        %534 = vmatpush1.msra.mxu0 0.0
        %535 = vmatprep.subr.mxu0 0.0
        %536 = vmatpush1.msra.mxu0 0.0
        %537 = vmatprep.subr.mxu0 0.0
        %538 = vmatpush1.msra.mxu0 0.0
        %539 = vmatprep.subr.mxu0 0.0
        %540 = vmatpush1.msra.mxu0 0.0
        %541 = vmatprep.subr.mxu0 0.0
        %542 = vmatpush1.msra.mxu0 0.0
        %543 = vmatprep.subr.mxu0 0.0
        %544 = vmatpush1.msra.mxu0 0.0
        %545 = vmatprep.subr.mxu0 0.0
        %546 = vmatpush1.msra.mxu0 0.0
        %547 = vmatprep.mubr.f32.mxu0 0.0
        %548 = vmatmul.mubr.f32.gmra.mrb[0].mxu0 %v466
        %v549 = vpop.f32.mrb[0].mxu0
        %v550 = vadd.f32 0.0, %v549
        %v551 = vpop.f32.mrb[0].mxu0
        %552 = vdwg.mxu0
        // Predicated region
        $region53: #{tpu_custom_call.1} parent=47 // pred_check
          %p553 = pneg %p339
        $region54: #{tpu_custom_call.1} parent=47 // pred_check_branch
          %555 = sbr.rel (%p553) target = $region56
        $region55: #{tpu_custom_call.1} parent=47 // pred_region
          %v556 = vld [vmem:[%s325] sm:$0xff]
          %v557 = vld [vmem:[%s6] sm:$0x1]
          %v559 = vlaneseq
          %v560 = vshrl.u32 %v559, 7
          %v561 = vsub.s32 0, %v560
          %v562 = vrot.slane %v557, %v561
          %v564 = vadd.f32 %v556, %v562
          %v565 = vadd.f32 %v564, %v550
          %566 = vst.msk [vmem:[%s321] sm:$0xff] %vm388, %v565
        $region56: #{tpu_custom_call.1} parent=47 // pred_fallthru
          _
        %p567 = scmp.gt.s32.totalorder %s26, 0
        // Predicated region
        $region57: #{tpu_custom_call.1} parent=47 // pred_check
          %p568 = pneg %p567
        $region58: #{tpu_custom_call.1} parent=47 // pred_check_branch
          %570 = sbr.rel (%p568) target = $region60
        $region59: #{tpu_custom_call.1} parent=47 // pred_region
          %v571 = vld [vmem:[%s321] sm:$0xff]
          %v572 = vadd.f32 %v571, %v550
          %573 = vst.msk [vmem:[%s321] sm:$0xff] %vm388, %v572
        $region60: #{tpu_custom_call.1} parent=47 // pred_fallthru
          _
        %s574 = sand.u32 %s208, 1
        %s575 = scalar_lea.sflag [#allocation4], %s574
        %s576 = sand.u32 %s208, 1
        %s577 = smul.addr %s576, 8
        %s578 = scalar_lea.vmem [#allocation3], %s577
        // Predicated region
        $region61: #{tpu_custom_call.1} parent=47 // pred_check
          %p579 = pneg %p218
        $region62: #{tpu_custom_call.1} parent=47 // pred_check_branch
          %581 = sbr.rel (%p579) target = $region64
        $region63: #{tpu_custom_call.1} parent=47 // pred_region
          %s583 = ssub.s32 128, 128
          %584 = vsyncadd %s575, %s583
          %s585 = smul.addr %s25, 128
          %s586 = scalar_lea.hbm %s7, %s585
          %s588 = sshll.u32 %s578, 4
          %s589 = int_to_ptr.vmem [resolvable:$true] %s588
          %591 = dma.vmem_to_hbm [thread:$0]  %s589, 128, %s586, %s575
        $region64: #{tpu_custom_call.1} parent=47 // pred_fallthru
          _
      $region48: #{tpu_custom_call.1} parent=5 // pred_fallthru
        _
      %p592 = scmp.le.s32.totalorder 2, %s16
      // Predicated region
      $region65: #{tpu_custom_call.1} parent=5 // pred_check
        %p593 = pneg %p592
      $region66: #{tpu_custom_call.1} parent=5 // pred_check_branch
        %595 = sbr.rel (%p593) target = $region68
      $region67: #{tpu_custom_call.1} parent=5 // pred_region
        %s596 = ssub.s32 %s16, 2
        // Predicated region
        $region69: #{tpu_custom_call.1} parent=67 // pred_check
          %p597 = pneg %p224
        $region70: #{tpu_custom_call.1} parent=67 // pred_check_branch
          %599 = sbr.rel (%p597) target = $region72
        $region71: #{tpu_custom_call.1} parent=67 // pred_region
          %s600 = sand.u32 %s209, 1
          %s601 = scalar_lea.sflag [#allocation4], %s600
          %s602 = sand.u32 %s209, 1
          %s603 = smul.addr %s602, 8
          %s604 = scalar_lea.vmem [#allocation3], %s603
          %605 = dma.done %s601, 128
        $region72: #{tpu_custom_call.1} parent=67 // pred_fallthru
          _
      $region68: #{tpu_custom_call.1} parent=5 // pred_fallthru
        _
    $region6: #{tpu_custom_call.1} parent=1 // loop_footer
      %s20 = sadd.s32 1, %s16
    $region7: #{tpu_custom_call.1} parent=1 // loop_footer_branch
      %15 = sbr.rel target = $region3
    $region8: #{tpu_custom_call.1} parent=1 // loop_exit
      _
    %606 = vsyncpa [#allocation4], 1
    %s607 = scalar_lea.sflag [#allocation4], 1
    %608 = vsyncpa %s607, 1

</llo_original>
